<compile_context>
chip_gen: v7x
topology: tpu7x:2x2x1
jax: 0.10.0
libtpu: 0.0.40
codegen_flags: <defaults>
</compile_context>

<pallas_src>
import jax
import jax.numpy as jnp
import numpy as np
from jax.experimental import pallas as pl
from jax.experimental.pallas import tpu as pltpu

# ---- problem sizes (small, consistent with the module) -----------------------
B = 8            # batch
D = 16           # flow data dimension
DH = D // 2      # half dimension (mask splits data in half)
H = 32           # hidden size of the s/t MLPs
H2 = 2 * H       # fused hidden size (s-half | t-half)
N_LAYERS = 4     # number of RealNVP layers
INPUT_DIM = D    # condition matrix rows
COND_DIM = 32    # condition_dim
BASE_HIDDEN = 64 # base_hidden_size
BASE_OUT = 1     # base_output_dim


def _leaky_relu(x):
    return jnp.where(x > 0, x, 0.01 * x)


# ---- fused kernel: all RealNVP.inverse layers + conditional base MLP ---------
def fused_flow_kernel(x_ref, c_ref,
                      w1_ref, b1_ref, w2_ref, b2_ref, w3_ref, b3_ref,
                      bw1_ref, bb1_ref, bw2_ref, bb2_ref,
                      x_out_ref, logdet_ref, u_ref):
    l = pl.program_id(0)
    n = pl.num_programs(0)

    # step 0: bring x into the resident output block (stays in VMEM all layers)
    @pl.when(l == 0)
    def _():
        x_out_ref[...] = x_ref[...]

    # bijector index for this grid step (bijectors applied in reverse order)
    b_idx = n - 1 - l
    mask_first = (b_idx % 2) == 0    # even layer: mask = [1]*DH + [0]*DH

    x_cur = x_out_ref[...]           # (B, D), resident in VMEM
    lo = x_cur[:, :DH]
    hi = x_cur[:, DH:]
    constant = jnp.where(mask_first, lo, hi)
    modified = jnp.where(mask_first, hi, lo)

    # fused s/t MLP (block-diagonal weights): one 3-matmul chain per layer
    w1 = w1_ref[0]; b1 = b1_ref[0]
    w2 = w2_ref[0]; b2 = b2_ref[0]
    w3 = w3_ref[0]; b3 = b3_ref[0]

    h1 = _leaky_relu(jnp.dot(constant, w1, preferred_element_type=jnp.float32) + b1)
    h2 = _leaky_relu(jnp.dot(h1, w2, preferred_element_type=jnp.float32) + b2)
    st = jnp.dot(h2, w3, preferred_element_type=jnp.float32) + b3     # (B, 2*DH)

    s = jnp.tanh(st[:, :DH])   # s-net ends in Tanh
    t = st[:, DH:]             # t-net linear output

    mod_new = (modified - t) * jnp.exp(-s)

    x_out_ref[...] = jnp.where(
        mask_first,
        jnp.concatenate([constant, mod_new], axis=1),   # mask[0] == 1
        jnp.concatenate([mod_new, constant], axis=1))   # mask[0] == 0

    # log_det_j for this bijector, packed into one output (row l = append order)
    logdet_ref[l] = jnp.sum(s, axis=1, keepdims=True)

    # conditional-base MLP: u = output_layer(linear_layer(c)), once at the end.
    # TODO(synk): on v7x this independent MLP could instead run on the 2nd
    # TensorCore as a separate kernel; fused here to keep a single launch.
    @pl.when(l == n - 1)
    def _():
        h = jnp.dot(c_ref[...], bw1_ref[...],
                    preferred_element_type=jnp.float32) + bb1_ref[...]
        u_ref[...] = jnp.dot(h, bw2_ref[...],
                             preferred_element_type=jnp.float32) + bb2_ref[...]


def _const_spec(shape):
    nd = len(shape)
    return pl.BlockSpec(shape, lambda l, nd=nd: (0,) * nd)


def _layer_spec(shape):
    # shape = (N_LAYERS, r, c); one layer slice per grid step, reverse order
    return pl.BlockSpec((1,) + tuple(shape[1:]),
                        lambda l: (N_LAYERS - 1 - l, 0, 0))


@jax.jit
def nf_forward(x, c, fused_flow, base_params):
    """NormalizingFlowModel.forward with conditional_base=True."""
    W1, B1, W2, B2, W3, B3 = fused_flow
    bw1, bb1, bw2, bb2 = base_params

    out_shapes = (
        jax.ShapeDtypeStruct((B, D), jnp.float32),
        jax.ShapeDtypeStruct((N_LAYERS, B, 1), jnp.float32),
        jax.ShapeDtypeStruct((INPUT_DIM, BASE_OUT), jnp.float32),
    )
    in_specs = [
        _const_spec((B, D)),
        _const_spec((INPUT_DIM, COND_DIM)),
        _layer_spec(W1.shape), _layer_spec(B1.shape),
        _layer_spec(W2.shape), _layer_spec(B2.shape),
        _layer_spec(W3.shape), _layer_spec(B3.shape),
        _const_spec(bw1.shape), _const_spec(bb1.shape),
        _const_spec(bw2.shape), _const_spec(bb2.shape),
    ]
    out_specs = (
        _const_spec((B, D)),
        _const_spec((N_LAYERS, B, 1)),
        _const_spec((INPUT_DIM, BASE_OUT)),
    )

    x_out, logdet, u = pl.pallas_call(
        fused_flow_kernel,
        out_shape=out_shapes,
        grid_spec=pltpu.PrefetchScalarGridSpec(
            num_scalar_prefetch=0,
            grid=(N_LAYERS,),
            in_specs=in_specs,
            out_specs=out_specs),
        compiler_params=pltpu.CompilerParams(
            dimension_semantics=("arbitrary",)),
    )(x, c, W1, B1, W2, B2, W3, B3, bw1, bb1, bw2, bb2)

    log_det = [logdet[i, :, 0] for i in range(N_LAYERS)]
    return x_out, log_det, u


# ---- host-side fusion of the per-layer s/t weights ---------------------------
def _block_diag(a, b):
    m, n = a.shape
    p, q = b.shape
    out = jnp.zeros((m + p, n + q), a.dtype)
    out = out.at[:m, :n].set(a)
    out = out.at[m:, n:].set(b)
    return out


def fuse_flow_params(flow_params):
    W1, B1, W2, B2, W3, B3 = [], [], [], [], [], []
    for p in flow_params:
        ws1, bs1, ws2, bs2, ws3, bs3, wt1, bt1, wt2, bt2, wt3, bt3 = p
        W1.append(jnp.concatenate([ws1, wt1], axis=1))   # (DH, 2H)
        B1.append(jnp.concatenate([bs1, bt1], axis=1))   # (1, 2H)
        W2.append(_block_diag(ws2, wt2))                 # (2H, 2H)
        B2.append(jnp.concatenate([bs2, bt2], axis=1))   # (1, 2H)
        W3.append(_block_diag(ws3, wt3))                 # (2H, 2DH)
        B3.append(jnp.concatenate([bs3, bt3], axis=1))   # (1, 2DH)
    return tuple(jnp.stack(a, axis=0) for a in (W1, B1, W2, B2, W3, B3))


# ---- deterministic parameter init (PyTorch Linear-style uniform) -------------
def _linear_params(key, fan_in, fan_out):
    kw, kb = jax.random.split(key)
    bound = 1.0 / np.sqrt(fan_in)
    w = jax.random.uniform(kw, (fan_in, fan_out), jnp.float32, -bound, bound)
    b = jax.random.uniform(kb, (1, fan_out), jnp.float32, -bound, bound)
    return w, b


def init_params(key):
    flow_params = []
    for _ in range(N_LAYERS):
        layer = []
        for _net in range(2):  # s-net then t-net
            for fi, fo in ((DH, H), (H, H), (H, DH)):
                key, sub = jax.random.split(key)
                w, b = _linear_params(sub, fi, fo)
                layer += [w, b]
        flow_params.append(tuple(layer))
    base = []
    for fi, fo in ((COND_DIM, BASE_HIDDEN), (BASE_HIDDEN, BASE_OUT)):
        key, sub = jax.random.split(key)
        w, b = _linear_params(sub, fi, fo)
        base += [w, b]
    return flow_params, tuple(base)


# ---- pure-JAX reference (un-fused weights) for correctness check -------------
def _ref_mlp(x, p, tanh_out):
    w1, b1, w2, b2, w3, b3 = p
    h1 = _leaky_relu(x @ w1 + b1)
    h2 = _leaky_relu(h1 @ w2 + b2)
    out = h2 @ w3 + b3
    return jnp.tanh(out) if tanh_out else out


def nf_forward_ref(x, c, flow_params, base_params):
    log_det = []
    for b_idx in range(N_LAYERS - 1, -1, -1):
        mask_first = (b_idx % 2 == 0)
        if mask_first:
            constant, modified = x[:, :DH], x[:, DH:]
        else:
            constant, modified = x[:, DH:], x[:, :DH]
        p = flow_params[b_idx]
        s = _ref_mlp(constant, p[:6], True)
        t = _ref_mlp(constant, p[6:], False)
        mod_new = (modified - t) * jnp.exp(-s)
        if mask_first:
            x = jnp.concatenate([constant, mod_new], axis=1)
        else:
            x = jnp.concatenate([mod_new, constant], axis=1)
        log_det.append(jnp.sum(s, axis=1))
    w1, b1, w2, b2 = base_params
    u = (c @ w1 + b1) @ w2 + b2
    return x, log_det, u


if __name__ == "__main__":
    key = jax.random.PRNGKey(0)
    kx, kc, kp = jax.random.split(key, 3)
    x = jax.random.normal(kx, (B, D), jnp.float32)
    c = jax.random.normal(kc, (INPUT_DIM, COND_DIM), jnp.float32)
    flow_params, base_params = init_params(kp)
    fused_flow = fuse_flow_params(flow_params)

    x_out, log_det, u = nf_forward(x, c, fused_flow, base_params)
    x_out = jax.block_until_ready(x_out)
    log_det = [jax.block_until_ready(l) for l in log_det]
    u = jax.block_until_ready(u)

    x_ref, log_det_ref, u_ref = nf_forward_ref(x, c, flow_params, base_params)
    np.testing.assert_allclose(np.asarray(x_out), np.asarray(x_ref),
                               rtol=1e-5, atol=1e-5)
    for got, want in zip(log_det, log_det_ref):
        np.testing.assert_allclose(np.asarray(got), np.asarray(want),
                                   rtol=1e-5, atol=1e-5)
    np.testing.assert_allclose(np.asarray(u), np.asarray(u_ref),
                               rtol=1e-5, atol=1e-5)

    print("KERNEL_OK")
</pallas_src>

<mosaic_0001>
module attributes {stable_mosaic.version = 11 : i64} {
  func.func @fused_flow_kernel(%arg0: i32, %arg1: memref<8x16xf32, #tpu.memory_space<vmem>>, %arg2: memref<16x32xf32, #tpu.memory_space<vmem>>, %arg3: memref<1x8x64xf32, #tpu.memory_space<vmem>>, %arg4: memref<1x1x64xf32, #tpu.memory_space<vmem>>, %arg5: memref<1x64x64xf32, #tpu.memory_space<vmem>>, %arg6: memref<1x1x64xf32, #tpu.memory_space<vmem>>, %arg7: memref<1x64x16xf32, #tpu.memory_space<vmem>>, %arg8: memref<1x1x16xf32, #tpu.memory_space<vmem>>, %arg9: memref<32x64xf32, #tpu.memory_space<vmem>>, %arg10: memref<1x64xf32, #tpu.memory_space<vmem>>, %arg11: memref<64x1xf32, #tpu.memory_space<vmem>>, %arg12: memref<1x1xf32, #tpu.memory_space<vmem>>, %arg13: memref<8x16xf32, #tpu.memory_space<vmem>>, %arg14: memref<4x8x1xf32, #tpu.memory_space<vmem>>, %arg15: memref<16x1xf32, #tpu.memory_space<vmem>>) attributes {dimension_semantics = [#tpu.dimension_semantics<arbitrary>], iteration_bounds = array<i64: 4>, scalar_prefetch = 0 : i64, scratch_operands = 0 : i64, tpu.core_type = #tpu.core_type<tc>, window_params = [{pipeline_mode = #tpu.pipeline_mode<synchronous>, transform_indices = @transform_0, window_bounds = array<i64: 8, 16>}, {pipeline_mode = #tpu.pipeline_mode<synchronous>, transform_indices = @transform_1, window_bounds = array<i64: 16, 32>}, {transform_indices = @transform_2, window_bounds = array<i64: 1, 8, 64>}, {transform_indices = @transform_3, window_bounds = array<i64: 1, 1, 64>}, {transform_indices = @transform_4, window_bounds = array<i64: 1, 64, 64>}, {transform_indices = @transform_5, window_bounds = array<i64: 1, 1, 64>}, {transform_indices = @transform_6, window_bounds = array<i64: 1, 64, 16>}, {transform_indices = @transform_7, window_bounds = array<i64: 1, 1, 16>}, {pipeline_mode = #tpu.pipeline_mode<synchronous>, transform_indices = @transform_8, window_bounds = array<i64: 32, 64>}, {pipeline_mode = #tpu.pipeline_mode<synchronous>, transform_indices = @transform_9, window_bounds = array<i64: 1, 64>}, {pipeline_mode = #tpu.pipeline_mode<synchronous>, transform_indices = @transform_10, window_bounds = array<i64: 64, 1>}, {pipeline_mode = #tpu.pipeline_mode<synchronous>, transform_indices = @transform_11, window_bounds = array<i64: 1, 1>}, {pipeline_mode = #tpu.pipeline_mode<synchronous>, transform_indices = @transform_12, window_bounds = array<i64: 8, 16>}, {pipeline_mode = #tpu.pipeline_mode<synchronous>, transform_indices = @transform_13, window_bounds = array<i64: 4, 8, 1>}, {pipeline_mode = #tpu.pipeline_mode<synchronous>, transform_indices = @transform_14, window_bounds = array<i64: 16, 1>}]} {
    %c0_i32 = arith.constant 0 : i32
    %0 = arith.cmpi eq, %arg0, %c0_i32 : i32
    %1 = arith.extui %0 : i1 to i32
    %c0_i32_0 = arith.constant 0 : i32
    %2 = arith.cmpi ne, %1, %c0_i32_0 : i32
    scf.if %2 {
      %c0_39 = arith.constant 0 : index
      %c0_40 = arith.constant 0 : index
      %72 = vector.load %arg1[%c0_39, %c0_40] : memref<8x16xf32, #tpu.memory_space<vmem>>, vector<8x16xf32>
      %c0_41 = arith.constant 0 : index
      %c0_42 = arith.constant 0 : index
      %73 = vector.load %arg13[%c0_41, %c0_42] : memref<8x16xf32, #tpu.memory_space<vmem>>, vector<8x16xf32>
      tpu.vector_store %arg13[%c0_41, %c0_42], %72 {strides = array<i32>} : memref<8x16xf32, #tpu.memory_space<vmem>>, vector<8x16xf32>,
    } else {
    }
    %c3_i32 = arith.constant 3 : i32
    %3 = arith.subi %c3_i32, %arg0 : i32
    %c2_i32 = arith.constant 2 : i32
    %c0_i32_1 = arith.constant 0 : i32
    %4 = arith.cmpi eq, %c2_i32, %c0_i32_1 : i32
    %c1_i32 = arith.constant 1 : i32
    %5 = arith.select %4, %c1_i32, %c2_i32 : i32
    %6 = arith.remsi %3, %5 : i32
    %c0_i32_2 = arith.constant 0 : i32
    %7 = arith.cmpi ne, %6, %c0_i32_2 : i32
    %c0_i32_3 = arith.constant 0 : i32
    %8 = arith.cmpi slt, %6, %c0_i32_3 : i32
    %c0_i32_4 = arith.constant 0 : i32
    %9 = arith.cmpi slt, %5, %c0_i32_4 : i32
    %10 = arith.xori %8, %9 : i1
    %11 = arith.andi %10, %7 : i1
    %12 = arith.addi %6, %5 : i32
    %13 = arith.select %11, %12, %6 : i32
    %c0_i32_5 = arith.constant 0 : i32
    %14 = arith.cmpi eq, %13, %c0_i32_5 : i32
    %c0 = arith.constant 0 : index
    %c0_6 = arith.constant 0 : index
    %15 = vector.load %arg13[%c0, %c0_6] : memref<8x16xf32, #tpu.memory_space<vmem>>, vector<8x16xf32>
    %16 = vector.extract_strided_slice %15 {offsets = [0, 0], sizes = [8, 8], strides = [1, 1]} : vector<8x16xf32> to vector<8x8xf32>
    %17 = vector.extract_strided_slice %15 {offsets = [0, 8], sizes = [8, 8], strides = [1, 1]} : vector<8x16xf32> to vector<8x8xf32>
    %18 = arith.select %14, %16, %17 : vector<8x8xf32>
    %19 = arith.select %14, %17, %16 : vector<8x8xf32>
    %c0_7 = arith.constant 0 : index
    %c0_8 = arith.constant 0 : index
    %c0_9 = arith.constant 0 : index
    %20 = vector.load %arg3[%c0_7, %c0_8, %c0_9] : memref<1x8x64xf32, #tpu.memory_space<vmem>>, vector<1x8x64xf32>
    %21 = vector.shape_cast %20 : vector<1x8x64xf32> to vector<8x64xf32>
    %c0_10 = arith.constant 0 : index
    %c0_11 = arith.constant 0 : index
    %c0_12 = arith.constant 0 : index
    %22 = vector.load %arg4[%c0_10, %c0_11, %c0_12] : memref<1x1x64xf32, #tpu.memory_space<vmem>>, vector<1x1x64xf32>
    %23 = vector.shape_cast %22 : vector<1x1x64xf32> to vector<1x64xf32>
    %c0_13 = arith.constant 0 : index
    %c0_14 = arith.constant 0 : index
    %c0_15 = arith.constant 0 : index
    %24 = vector.load %arg5[%c0_13, %c0_14, %c0_15] : memref<1x64x64xf32, #tpu.memory_space<vmem>>, vector<1x64x64xf32>
    %25 = vector.shape_cast %24 : vector<1x64x64xf32> to vector<64x64xf32>
    %c0_16 = arith.constant 0 : index
    %c0_17 = arith.constant 0 : index
    %c0_18 = arith.constant 0 : index
    %26 = vector.load %arg6[%c0_16, %c0_17, %c0_18] : memref<1x1x64xf32, #tpu.memory_space<vmem>>, vector<1x1x64xf32>
    %27 = vector.shape_cast %26 : vector<1x1x64xf32> to vector<1x64xf32>
    %c0_19 = arith.constant 0 : index
    %c0_20 = arith.constant 0 : index
    %c0_21 = arith.constant 0 : index
    %28 = vector.load %arg7[%c0_19, %c0_20, %c0_21] : memref<1x64x16xf32, #tpu.memory_space<vmem>>, vector<1x64x16xf32>
    %29 = vector.shape_cast %28 : vector<1x64x16xf32> to vector<64x16xf32>
    %c0_22 = arith.constant 0 : index
    %c0_23 = arith.constant 0 : index
    %c0_24 = arith.constant 0 : index
    %30 = vector.load %arg8[%c0_22, %c0_23, %c0_24] : memref<1x1x16xf32, #tpu.memory_space<vmem>>, vector<1x1x16xf32>
    %31 = vector.shape_cast %30 : vector<1x1x16xf32> to vector<1x16xf32>
    %cst = arith.constant dense<0.000000e+00> : vector<8x64xf32>
    %32 = tpu.matmul %18, %21, %cst {dimension_numbers = #tpu.dot_dimension_numbers<[1], [0], [0], [1], [0, 0, 1, 1], [], []>} : vector<8x8xf32>, vector<8x64xf32>, vector<8x64xf32> -> vector<8x64xf32>
    %33 = vector.broadcast %23 : vector<1x64xf32> to vector<8x64xf32>
    %34 = arith.addf %32, %33 : vector<8x64xf32>
    %cst_25 = arith.constant 0.000000e+00 : f32
    %35 = vector.broadcast %cst_25 : f32 to vector<8x64xf32>
    %36 = arith.cmpf ogt, %34, %35 : vector<8x64xf32>
    %cst_26 = arith.constant 0.00999999977 : f32
    %37 = vector.broadcast %cst_26 : f32 to vector<8x64xf32>
    %38 = arith.mulf %37, %34 : vector<8x64xf32>
    %39 = arith.select %36, %34, %38 : vector<8x64xi1>, vector<8x64xf32>
    %cst_27 = arith.constant dense<0.000000e+00> : vector<8x64xf32>
    %40 = tpu.matmul %39, %25, %cst_27 {dimension_numbers = #tpu.dot_dimension_numbers<[1], [0], [0], [1], [0, 0, 1, 1], [], []>} : vector<8x64xf32>, vector<64x64xf32>, vector<8x64xf32> -> vector<8x64xf32>
    %41 = vector.broadcast %27 : vector<1x64xf32> to vector<8x64xf32>
    %42 = arith.addf %40, %41 : vector<8x64xf32>
    %cst_28 = arith.constant 0.000000e+00 : f32
    %43 = vector.broadcast %cst_28 : f32 to vector<8x64xf32>
    %44 = arith.cmpf ogt, %42, %43 : vector<8x64xf32>
    %cst_29 = arith.constant 0.00999999977 : f32
    %45 = vector.broadcast %cst_29 : f32 to vector<8x64xf32>
    %46 = arith.mulf %45, %42 : vector<8x64xf32>
    %47 = arith.select %44, %42, %46 : vector<8x64xi1>, vector<8x64xf32>
    %cst_30 = arith.constant dense<0.000000e+00> : vector<8x16xf32>
    %48 = tpu.matmul %47, %29, %cst_30 {dimension_numbers = #tpu.dot_dimension_numbers<[1], [0], [0], [1], [0, 0, 1, 1], [], []>} : vector<8x64xf32>, vector<64x16xf32>, vector<8x16xf32> -> vector<8x16xf32>
    %49 = vector.broadcast %31 : vector<1x16xf32> to vector<8x16xf32>
    %50 = arith.addf %48, %49 : vector<8x16xf32>
    %51 = vector.extract_strided_slice %50 {offsets = [0, 0], sizes = [8, 8], strides = [1, 1]} : vector<8x16xf32> to vector<8x8xf32>
    %52 = math.tanh %51 : vector<8x8xf32>
    %53 = vector.extract_strided_slice %50 {offsets = [0, 8], sizes = [8, 8], strides = [1, 1]} : vector<8x16xf32> to vector<8x8xf32>
    %54 = arith.subf %19, %53 : vector<8x8xf32>
    %cst_31 = arith.constant 0.000000e+00 : f32
    %55 = vector.broadcast %cst_31 : f32 to vector<8x8xf32>
    %56 = arith.subf %55, %52 : vector<8x8xf32>
    %57 = math.exp %56 : vector<8x8xf32>
    %58 = arith.mulf %54, %57 : vector<8x8xf32>
    %59 = tpu.concatenate %18, %58 in 1 : vector<8x8xf32>, vector<8x8xf32> -> vector<8x16xf32>
    %60 = tpu.concatenate %58, %18 in 1 : vector<8x8xf32>, vector<8x8xf32> -> vector<8x16xf32>
    %61 = arith.select %14, %59, %60 : vector<8x16xf32>
    %c0_32 = arith.constant 0 : index
    %c0_33 = arith.constant 0 : index
    %62 = vector.load %arg13[%c0_32, %c0_33] : memref<8x16xf32, #tpu.memory_space<vmem>>, vector<8x16xf32>
    tpu.vector_store %arg13[%c0_32, %c0_33], %61 {strides = array<i32>} : memref<8x16xf32, #tpu.memory_space<vmem>>, vector<8x16xf32>,
    %cst_34 = arith.constant dense<0.000000e+00> : vector<8xf32>
    %63 = vector.multi_reduction <add>, %52, %cst_34 [1] : vector<8x8xf32> to vector<8xf32>
    %64 = vector.shape_cast %63 : vector<8xf32> to vector<8x1xf32>
    %65 = arith.index_cast %arg0 : i32 to index
    %c0_35 = arith.constant 0 : index
    %c0_36 = arith.constant 0 : index
    %66 = vector.load %arg14[%65, %c0_35, %c0_36] : memref<4x8x1xf32, #tpu.memory_space<vmem>>, vector<1x8x1xf32>
    %67 = vector.shape_cast %66 : vector<1x8x1xf32> to vector<8x1xf32>
    %68 = vector.shape_cast %64 : vector<8x1xf32> to vector<1x8x1xf32>
    tpu.vector_store %arg14[%65, %c0_35, %c0_36], %68 {strides = array<i32>} : memref<4x8x1xf32, #tpu.memory_space<vmem>>, vector<1x8x1xf32>,
    %c3_i32_37 = arith.constant 3 : i32
    %69 = arith.cmpi eq, %arg0, %c3_i32_37 : i32
    %70 = arith.extui %69 : i1 to i32
    %c0_i32_38 = arith.constant 0 : i32
    %71 = arith.cmpi ne, %70, %c0_i32_38 : i32
    scf.if %71 {
      %c0_39 = arith.constant 0 : index
      %c0_40 = arith.constant 0 : index
      %72 = vector.load %arg2[%c0_39, %c0_40] : memref<16x32xf32, #tpu.memory_space<vmem>>, vector<16x32xf32>
      %c0_41 = arith.constant 0 : index
      %c0_42 = arith.constant 0 : index
      %73 = vector.load %arg9[%c0_41, %c0_42] : memref<32x64xf32, #tpu.memory_space<vmem>>, vector<32x64xf32>
      %cst_43 = arith.constant dense<0.000000e+00> : vector<16x64xf32>
      %74 = tpu.matmul %72, %73, %cst_43 {dimension_numbers = #tpu.dot_dimension_numbers<[1], [0], [0], [1], [0, 0, 1, 1], [], []>} : vector<16x32xf32>, vector<32x64xf32>, vector<16x64xf32> -> vector<16x64xf32>
      %c0_44 = arith.constant 0 : index
      %c0_45 = arith.constant 0 : index
      %75 = vector.load %arg10[%c0_44, %c0_45] : memref<1x64xf32, #tpu.memory_space<vmem>>, vector<1x64xf32>
      %76 = vector.broadcast %75 : vector<1x64xf32> to vector<16x64xf32>
      %77 = arith.addf %74, %76 : vector<16x64xf32>
      %c0_46 = arith.constant 0 : index
      %c0_47 = arith.constant 0 : index
      %78 = vector.load %arg11[%c0_46, %c0_47] : memref<64x1xf32, #tpu.memory_space<vmem>>, vector<64x1xf32>
      %cst_48 = arith.constant dense<0.000000e+00> : vector<16x1xf32>
      %79 = tpu.matmul %77, %78, %cst_48 {dimension_numbers = #tpu.dot_dimension_numbers<[1], [0], [0], [1], [0, 0, 1, 1], [], []>} : vector<16x64xf32>, vector<64x1xf32>, vector<16x1xf32> -> vector<16x1xf32>
      %c0_49 = arith.constant 0 : index
      %c0_50 = arith.constant 0 : index
      %80 = vector.load %arg12[%c0_49, %c0_50] : memref<1x1xf32, #tpu.memory_space<vmem>>, vector<1x1xf32>
      %81 = vector.broadcast %80 : vector<1x1xf32> to vector<16x1xf32>
      %82 = arith.addf %79, %81 : vector<16x1xf32>
      %c0_51 = arith.constant 0 : index
      %c0_52 = arith.constant 0 : index
      %83 = vector.load %arg15[%c0_51, %c0_52] : memref<16x1xf32, #tpu.memory_space<vmem>>, vector<16x1xf32>
      tpu.vector_store %arg15[%c0_51, %c0_52], %82 {strides = array<i32>} : memref<16x1xf32, #tpu.memory_space<vmem>>, vector<16x1xf32>,
    } else {
    }
    return
  }
  func.func @transform_0(%arg0: i32) -> (i32, i32) {
    %c0_i32 = arith.constant 0 : i32
    %c0_i32_0 = arith.constant 0 : i32
    %c0_i32_1 = arith.constant 0 : i32
    return %c0_i32, %c0_i32_0 : i32, i32
  }
  func.func @transform_1(%arg0: i32) -> (i32, i32) {
    %c0_i32 = arith.constant 0 : i32
    %c0_i32_0 = arith.constant 0 : i32
    %c0_i32_1 = arith.constant 0 : i32
    return %c0_i32, %c0_i32_0 : i32, i32
  }
  func.func @transform_2(%arg0: i32) -> (i32, i32, i32) {
    %c3_i32 = arith.constant 3 : i32
    %0 = arith.subi %c3_i32, %arg0 : i32
    %c0_i32 = arith.constant 0 : i32
    %c0_i32_0 = arith.constant 0 : i32
    %c0_i32_1 = arith.constant 0 : i32
    return %0, %c0_i32, %c0_i32_0 : i32, i32, i32
  }
  func.func @transform_3(%arg0: i32) -> (i32, i32, i32) {
    %c3_i32 = arith.constant 3 : i32
    %0 = arith.subi %c3_i32, %arg0 : i32
    %c0_i32 = arith.constant 0 : i32
    %c0_i32_0 = arith.constant 0 : i32
    %c0_i32_1 = arith.constant 0 : i32
    return %0, %c0_i32, %c0_i32_0 : i32, i32, i32
  }
  func.func @transform_4(%arg0: i32) -> (i32, i32, i32) {
    %c3_i32 = arith.constant 3 : i32
    %0 = arith.subi %c3_i32, %arg0 : i32
    %c0_i32 = arith.constant 0 : i32
    %c0_i32_0 = arith.constant 0 : i32
    %c0_i32_1 = arith.constant 0 : i32
    return %0, %c0_i32, %c0_i32_0 : i32, i32, i32
  }
  func.func @transform_5(%arg0: i32) -> (i32, i32, i32) {
    %c3_i32 = arith.constant 3 : i32
    %0 = arith.subi %c3_i32, %arg0 : i32
    %c0_i32 = arith.constant 0 : i32
    %c0_i32_0 = arith.constant 0 : i32
    %c0_i32_1 = arith.constant 0 : i32
    return %0, %c0_i32, %c0_i32_0 : i32, i32, i32
  }
  func.func @transform_6(%arg0: i32) -> (i32, i32, i32) {
    %c3_i32 = arith.constant 3 : i32
    %0 = arith.subi %c3_i32, %arg0 : i32
    %c0_i32 = arith.constant 0 : i32
    %c0_i32_0 = arith.constant 0 : i32
    %c0_i32_1 = arith.constant 0 : i32
    return %0, %c0_i32, %c0_i32_0 : i32, i32, i32
  }
  func.func @transform_7(%arg0: i32) -> (i32, i32, i32) {
    %c3_i32 = arith.constant 3 : i32
    %0 = arith.subi %c3_i32, %arg0 : i32
    %c0_i32 = arith.constant 0 : i32
    %c0_i32_0 = arith.constant 0 : i32
    %c0_i32_1 = arith.constant 0 : i32
    return %0, %c0_i32, %c0_i32_0 : i32, i32, i32
  }
  func.func @transform_8(%arg0: i32) -> (i32, i32) {
    %c0_i32 = arith.constant 0 : i32
    %c0_i32_0 = arith.constant 0 : i32
    %c0_i32_1 = arith.constant 0 : i32
    return %c0_i32, %c0_i32_0 : i32, i32
  }
  func.func @transform_9(%arg0: i32) -> (i32, i32) {
    %c0_i32 = arith.constant 0 : i32
    %c0_i32_0 = arith.constant 0 : i32
    %c0_i32_1 = arith.constant 0 : i32
    return %c0_i32, %c0_i32_0 : i32, i32
  }
  func.func @transform_10(%arg0: i32) -> (i32, i32) {
    %c0_i32 = arith.constant 0 : i32
    %c0_i32_0 = arith.constant 0 : i32
    %c0_i32_1 = arith.constant 0 : i32
    return %c0_i32, %c0_i32_0 : i32, i32
  }
  func.func @transform_11(%arg0: i32) -> (i32, i32) {
    %c0_i32 = arith.constant 0 : i32
    %c0_i32_0 = arith.constant 0 : i32
    %c0_i32_1 = arith.constant 0 : i32
    return %c0_i32, %c0_i32_0 : i32, i32
  }
  func.func @transform_12(%arg0: i32) -> (i32, i32) {
    %c0_i32 = arith.constant 0 : i32
    %c0_i32_0 = arith.constant 0 : i32
    %c0_i32_1 = arith.constant 0 : i32
    return %c0_i32, %c0_i32_0 : i32, i32
  }
  func.func @transform_13(%arg0: i32) -> (i32, i32, i32) {
    %c0_i32 = arith.constant 0 : i32
    %c0_i32_0 = arith.constant 0 : i32
    %c0_i32_1 = arith.constant 0 : i32
    %c0_i32_2 = arith.constant 0 : i32
    return %c0_i32, %c0_i32_0, %c0_i32_1 : i32, i32, i32
  }
  func.func @transform_14(%arg0: i32) -> (i32, i32) {
    %c0_i32 = arith.constant 0 : i32
    %c0_i32_0 = arith.constant 0 : i32
    %c0_i32_1 = arith.constant 0 : i32
    return %c0_i32, %c0_i32_0 : i32, i32
  }
}

</mosaic_0001>

<llo_original>
// kernel: nf_forward.1
$region0: #{nf_forward.1}
  #allocation0 [shape = 'u32[]', space=smem, size = 0x4, offset = 0x4, fixed_abs, tag = 'smem constant byte address 0x4 - core index']
  #allocation1 [shape = 'u32[144,128]{1,0:T(1,128)}', space=vmem, size = 0x12000, scoped, tag = 'internal scratch']
  #allocation2 [shape = 'f32[1,1]{1,0:T(1,128)S(1)}', space=vmem, size = 0x200, scoped, tag = 'scoped memory for nf_forward.1']
  %s0 = inlined_call_operand.vmem [shape: f32[8,16], index: 0, kind: input, shape index: {}]
  %s1 = inlined_call_operand.vmem [shape: f32[16,32], index: 1, kind: input, shape index: {}]
  %s2 = inlined_call_operand.vmem [shape: f32[4,8,64], index: 2, kind: input, shape index: {}]
  %s3 = inlined_call_operand.hbm [shape: f32[4,1,64], index: 3, kind: input, shape index: {}]
  %s4 = inlined_call_operand.vmem [shape: f32[4,64,64], index: 4, kind: input, shape index: {}]
  %s5 = inlined_call_operand.hbm [shape: f32[4,1,64], index: 5, kind: input, shape index: {}]
  %s6 = inlined_call_operand.vmem [shape: f32[4,64,16], index: 6, kind: input, shape index: {}]
  %s7 = inlined_call_operand.vmem [shape: f32[4,1,16], index: 7, kind: input, shape index: {}]
  %s8 = inlined_call_operand.vmem [shape: f32[32,64], index: 8, kind: input, shape index: {}]
  %s9 = inlined_call_operand.vmem [shape: f32[1,64], index: 9, kind: input, shape index: {}]
  %s10 = inlined_call_operand.vmem [shape: f32[64,1], index: 10, kind: input, shape index: {}]
  %s11 = inlined_call_operand.<no memory space> [shape: f32[1,1], index: 11, kind: input, shape index: {}]
  %s12 = inlined_call_operand.hbm [shape: f32[8,16], index: 12, kind: output, shape index: {0}]
  %s13 = inlined_call_operand.vmem [shape: f32[4,8,1], index: 13, kind: output, shape index: {1}]
  %s14 = inlined_call_operand.vmem [shape: f32[16,1], index: 14, kind: output, shape index: {2}]
  %15 = xla_tuple %s12, %s13, %s14
  %s16 = sld [smem:[#allocation0]]
  $region113: #{nf_forward.1} parent=0
    _
  %s18 = ssub.s32 1, %s16
  %s19 = scalar_select 0, %s18, %s16
  %v20 = vstv %s11
  %21 = vst [vmem:[#allocation2] sm:$0x1] %v20
  $region1: #{nf_forward.1} parent=0
    #allocation3 [shape = 'u8[1024]{0}', space=vmem, size = 0x400, scoped, tag = 'input window, operand 3']
    #allocation4 [shape = 's32[2]{0}', space=sflag, size = 0x8, scoped, tag = 'scoped memory for nf_forward.1']
    #allocation5 [shape = 's32[2]{0}', space=sflag, size = 0x8, scoped, tag = 'scoped memory for nf_forward.1']
    #allocation6 [shape = 'u8[1024]{0}', space=vmem, size = 0x400, scoped, tag = 'input window, operand 5']
    #allocation7 [shape = 's32[2]{0}', space=sflag, size = 0x8, scoped, tag = 'scoped memory for nf_forward.1']
    #allocation8 [shape = 'u8[4096]{0}', space=vmem, size = 0x1000, scoped, tag = 'output window, operand 0, single buffered']
    %22 = vsyncpa [#allocation4], 0
    %s23 = scalar_lea.sflag [#allocation4], 1
    %24 = vsyncpa %s23, 0
    %25 = vsyncpa [#allocation7], 0
    %s26 = scalar_lea.sflag [#allocation7], 1
    %27 = vsyncpa %s26, 0
    %28 = vsyncpa [#allocation5], 0
    loop: start=0, step=1, limit=6
    $region2: #{nf_forward.1} parent=1 // loop_pre_header
      _
    $region3: #{nf_forward.1} parent=1 // loop_header
      %s30 = sphi 0, %s34
      %p31 = scmp.ge.s32.totalorder %s30, 6
      %s38 = sphi 0, %s38
      %s40 = sphi 0, %s38
      %s41 = sphi 0, %s40
      %s55 = sphi 0, %s41
      %s59 = sphi 0, %s59
      %s61 = sphi 0, %s59
      %s62 = sphi 0, %s61
      %s76 = sphi 0, %s62
      %s84 = sphi 0, %s86
      %s87 = sphi 0, %s84
      %s88 = sphi 0, %s87
      %s104 = sphi 0, %s88
      %s112 = sphi 0, %s114
      %s115 = sphi 0, %s112
      %s116 = sphi 0, %s115
      %s132 = sphi 0, %s116
      %s140 = sphi 0, %s142
      %s143 = sphi 0, %s140
      %s144 = sphi 0, %s143
      %s160 = sphi 0, %s144
      %s168 = sphi 0, %s170
      %s171 = sphi 0, %s168
      %s172 = sphi 0, %s171
      %s188 = sphi 0, %s172
      %s196 = sphi 0, %s198
      %s199 = sphi 0, %s196
      %s200 = sphi 0, %s199
      %s216 = sphi 0, %s200
      %s224 = sphi 0, %s226
      %s227 = sphi 0, %s224
      %s228 = sphi 0, %s227
      %s244 = sphi 0, %s228
      %s248 = sphi 0, %s248
      %s250 = sphi 0, %s248
      %s251 = sphi 0, %s250
      %s265 = sphi 0, %s251
      %s269 = sphi 0, %s269
      %s271 = sphi 0, %s269
      %s272 = sphi 0, %s271
      %s286 = sphi 0, %s272
      %s290 = sphi 0, %s290
      %s292 = sphi 0, %s290
      %s293 = sphi 0, %s292
      %s307 = sphi 0, %s293
      %s311 = sphi 0, %s311
      %s313 = sphi 0, %s311
      %s314 = sphi 0, %s313
      %s328 = sphi 0, %s314
      %s332 = sphi 0, %s332
      %s334 = sphi 0, %s332
      %s335 = sphi 0, %s334
      %s349 = sphi 0, %s335
      %s353 = sphi 0, %s353
      %s355 = sphi 0, %s353
      %s356 = sphi 0, %s355
      %s370 = sphi 0, %s356
      %s374 = sphi 0, %s374
      %s376 = sphi 0, %s374
      %s377 = sphi 0, %s376
      %s391 = sphi 0, %s377
    $region4: #{nf_forward.1} parent=1 // loop_header_branch
      %33 = sbr.rel (%p31) target = $region8
    $region5: #{nf_forward.1} parent=1 // loop_body
      %s35 = ssub.s32 %s30, 1
      %s36 = ssub.s32 %s30, 2
      %s37 = sadd.s32 %s30, 1
      %s39 = sadd.s32 %s38, 1
      %p42 = scmp.eq.s32.totalorder %s30, 3
      %p43 = scmp.ne.s32.totalorder %s38, %s40
      %p44 = scmp.eq.s32.totalorder %s30, 0
      %p45 = por %p43, %p44
      %p46 = scmp.ne.s32.totalorder %s38, %s40
      %p47 = scmp.eq.s32.totalorder %s35, 3
      %p48 = por %p46, %p47
      %p49 = scmp.ne.s32.totalorder %s40, %s41
      %p50 = scmp.eq.s32.totalorder %s35, 0
      %p51 = por %p49, %p50
      %p52 = scmp.ne.s32.totalorder %s40, %s41
      %p53 = scmp.eq.s32.totalorder %s36, 3
      %p54 = por %p52, %p53
      %p56 = scmp.ne.s32.totalorder %s41, %s55
      %p57 = scmp.eq.s32.totalorder %s36, 0
      %p58 = por %p56, %p57
      %s60 = sadd.s32 %s59, 1
      %p63 = scmp.eq.s32.totalorder %s30, 3
      %p64 = scmp.ne.s32.totalorder %s59, %s61
      %p65 = scmp.eq.s32.totalorder %s30, 0
      %p66 = por %p64, %p65
      %p67 = scmp.ne.s32.totalorder %s59, %s61
      %p68 = scmp.eq.s32.totalorder %s35, 3
      %p69 = por %p67, %p68
      %p70 = scmp.ne.s32.totalorder %s61, %s62
      %p71 = scmp.eq.s32.totalorder %s35, 0
      %p72 = por %p70, %p71
      %p73 = scmp.ne.s32.totalorder %s61, %s62
      %p74 = scmp.eq.s32.totalorder %s36, 3
      %p75 = por %p73, %p74
      %p77 = scmp.ne.s32.totalorder %s62, %s76
      %p78 = scmp.eq.s32.totalorder %s36, 0
      %p79 = por %p77, %p78
      %s80 = ssub.s32 3, %s30
      %s81 = ssub.s32 3, %s37
      %s82 = ssub.s32 %s80, %s81
      %p83 = scmp.eq.s32.totalorder %s82, 0
      %s85 = sadd.s32 %s84, 1
      %s86 = scalar_select %p83, %s84, %s85
      %p89 = pneg %p83
      %p90 = scmp.eq.s32.totalorder %s30, 3
      %p91 = por %p89, %p90
      %p92 = scmp.ne.s32.totalorder %s84, %s87
      %p93 = scmp.eq.s32.totalorder %s30, 0
      %p94 = por %p92, %p93
      %p95 = scmp.ne.s32.totalorder %s84, %s87
      %p96 = scmp.eq.s32.totalorder %s35, 3
      %p97 = por %p95, %p96
      %p98 = scmp.ne.s32.totalorder %s87, %s88
      %p99 = scmp.eq.s32.totalorder %s35, 0
      %p100 = por %p98, %p99
      %p101 = scmp.ne.s32.totalorder %s87, %s88
      %p102 = scmp.eq.s32.totalorder %s36, 3
      %p103 = por %p101, %p102
      %p105 = scmp.ne.s32.totalorder %s88, %s104
      %p106 = scmp.eq.s32.totalorder %s36, 0
      %p107 = por %p105, %p106
      %s108 = ssub.s32 3, %s30
      %s109 = ssub.s32 3, %s37
      %s110 = ssub.s32 %s108, %s109
      %p111 = scmp.eq.s32.totalorder %s110, 0
      %s113 = sadd.s32 %s112, 1
      %s114 = scalar_select %p111, %s112, %s113
      %p117 = pneg %p111
      %p118 = scmp.eq.s32.totalorder %s30, 3
      %p119 = por %p117, %p118
      %p120 = scmp.ne.s32.totalorder %s112, %s115
      %p121 = scmp.eq.s32.totalorder %s30, 0
      %p122 = por %p120, %p121
      %p123 = scmp.ne.s32.totalorder %s112, %s115
      %p124 = scmp.eq.s32.totalorder %s35, 3
      %p125 = por %p123, %p124
      %p126 = scmp.ne.s32.totalorder %s115, %s116
      %p127 = scmp.eq.s32.totalorder %s35, 0
      %p128 = por %p126, %p127
      %p129 = scmp.ne.s32.totalorder %s115, %s116
      %p130 = scmp.eq.s32.totalorder %s36, 3
      %p131 = por %p129, %p130
      %p133 = scmp.ne.s32.totalorder %s116, %s132
      %p134 = scmp.eq.s32.totalorder %s36, 0
      %p135 = por %p133, %p134
      %s136 = ssub.s32 3, %s30
      %s137 = ssub.s32 3, %s37
      %s138 = ssub.s32 %s136, %s137
      %p139 = scmp.eq.s32.totalorder %s138, 0
      %s141 = sadd.s32 %s140, 1
      %s142 = scalar_select %p139, %s140, %s141
      %p145 = pneg %p139
      %p146 = scmp.eq.s32.totalorder %s30, 3
      %p147 = por %p145, %p146
      %p148 = scmp.ne.s32.totalorder %s140, %s143
      %p149 = scmp.eq.s32.totalorder %s30, 0
      %p150 = por %p148, %p149
      %p151 = scmp.ne.s32.totalorder %s140, %s143
      %p152 = scmp.eq.s32.totalorder %s35, 3
      %p153 = por %p151, %p152
      %p154 = scmp.ne.s32.totalorder %s143, %s144
      %p155 = scmp.eq.s32.totalorder %s35, 0
      %p156 = por %p154, %p155
      %p157 = scmp.ne.s32.totalorder %s143, %s144
      %p158 = scmp.eq.s32.totalorder %s36, 3
      %p159 = por %p157, %p158
      %p161 = scmp.ne.s32.totalorder %s144, %s160
      %p162 = scmp.eq.s32.totalorder %s36, 0
      %p163 = por %p161, %p162
      %s164 = ssub.s32 3, %s30
      %s165 = ssub.s32 3, %s37
      %s166 = ssub.s32 %s164, %s165
      %p167 = scmp.eq.s32.totalorder %s166, 0
      %s169 = sadd.s32 %s168, 1
      %s170 = scalar_select %p167, %s168, %s169
      %p173 = pneg %p167
      %p174 = scmp.eq.s32.totalorder %s30, 3
      %p175 = por %p173, %p174
      %p176 = scmp.ne.s32.totalorder %s168, %s171
      %p177 = scmp.eq.s32.totalorder %s30, 0
      %p178 = por %p176, %p177
      %p179 = scmp.ne.s32.totalorder %s168, %s171
      %p180 = scmp.eq.s32.totalorder %s35, 3
      %p181 = por %p179, %p180
      %p182 = scmp.ne.s32.totalorder %s171, %s172
      %p183 = scmp.eq.s32.totalorder %s35, 0
      %p184 = por %p182, %p183
      %p185 = scmp.ne.s32.totalorder %s171, %s172
      %p186 = scmp.eq.s32.totalorder %s36, 3
      %p187 = por %p185, %p186
      %p189 = scmp.ne.s32.totalorder %s172, %s188
      %p190 = scmp.eq.s32.totalorder %s36, 0
      %p191 = por %p189, %p190
      %s192 = ssub.s32 3, %s30
      %s193 = ssub.s32 3, %s37
      %s194 = ssub.s32 %s192, %s193
      %p195 = scmp.eq.s32.totalorder %s194, 0
      %s197 = sadd.s32 %s196, 1
      %s198 = scalar_select %p195, %s196, %s197
      %p201 = pneg %p195
      %p202 = scmp.eq.s32.totalorder %s30, 3
      %p203 = por %p201, %p202
      %p204 = scmp.ne.s32.totalorder %s196, %s199
      %p205 = scmp.eq.s32.totalorder %s30, 0
      %p206 = por %p204, %p205
      %p207 = scmp.ne.s32.totalorder %s196, %s199
      %p208 = scmp.eq.s32.totalorder %s35, 3
      %p209 = por %p207, %p208
      %p210 = scmp.ne.s32.totalorder %s199, %s200
      %p211 = scmp.eq.s32.totalorder %s35, 0
      %p212 = por %p210, %p211
      %p213 = scmp.ne.s32.totalorder %s199, %s200
      %p214 = scmp.eq.s32.totalorder %s36, 3
      %p215 = por %p213, %p214
      %p217 = scmp.ne.s32.totalorder %s200, %s216
      %p218 = scmp.eq.s32.totalorder %s36, 0
      %p219 = por %p217, %p218
      %s220 = ssub.s32 3, %s30
      %s221 = ssub.s32 3, %s37
      %s222 = ssub.s32 %s220, %s221
      %p223 = scmp.eq.s32.totalorder %s222, 0
      %s225 = sadd.s32 %s224, 1
      %s226 = scalar_select %p223, %s224, %s225
      %p229 = pneg %p223
      %p230 = scmp.eq.s32.totalorder %s30, 3
      %p231 = por %p229, %p230
      %p232 = scmp.ne.s32.totalorder %s224, %s227
      %p233 = scmp.eq.s32.totalorder %s30, 0
      %p234 = por %p232, %p233
      %p235 = scmp.ne.s32.totalorder %s224, %s227
      %p236 = scmp.eq.s32.totalorder %s35, 3
      %p237 = por %p235, %p236
      %p238 = scmp.ne.s32.totalorder %s227, %s228
      %p239 = scmp.eq.s32.totalorder %s35, 0
      %p240 = por %p238, %p239
      %p241 = scmp.ne.s32.totalorder %s227, %s228
      %p242 = scmp.eq.s32.totalorder %s36, 3
      %p243 = por %p241, %p242
      %p245 = scmp.ne.s32.totalorder %s228, %s244
      %p246 = scmp.eq.s32.totalorder %s36, 0
      %p247 = por %p245, %p246
      %s249 = sadd.s32 %s248, 1
      %p252 = scmp.eq.s32.totalorder %s30, 3
      %p253 = scmp.ne.s32.totalorder %s248, %s250
      %p254 = scmp.eq.s32.totalorder %s30, 0
      %p255 = por %p253, %p254
      %p256 = scmp.ne.s32.totalorder %s248, %s250
      %p257 = scmp.eq.s32.totalorder %s35, 3
      %p258 = por %p256, %p257
      %p259 = scmp.ne.s32.totalorder %s250, %s251
      %p260 = scmp.eq.s32.totalorder %s35, 0
      %p261 = por %p259, %p260
      %p262 = scmp.ne.s32.totalorder %s250, %s251
      %p263 = scmp.eq.s32.totalorder %s36, 3
      %p264 = por %p262, %p263
      %p266 = scmp.ne.s32.totalorder %s251, %s265
      %p267 = scmp.eq.s32.totalorder %s36, 0
      %p268 = por %p266, %p267
      %s270 = sadd.s32 %s269, 1
      %p273 = scmp.eq.s32.totalorder %s30, 3
      %p274 = scmp.ne.s32.totalorder %s269, %s271
      %p275 = scmp.eq.s32.totalorder %s30, 0
      %p276 = por %p274, %p275
      %p277 = scmp.ne.s32.totalorder %s269, %s271
      %p278 = scmp.eq.s32.totalorder %s35, 3
      %p279 = por %p277, %p278
      %p280 = scmp.ne.s32.totalorder %s271, %s272
      %p281 = scmp.eq.s32.totalorder %s35, 0
      %p282 = por %p280, %p281
      %p283 = scmp.ne.s32.totalorder %s271, %s272
      %p284 = scmp.eq.s32.totalorder %s36, 3
      %p285 = por %p283, %p284
      %p287 = scmp.ne.s32.totalorder %s272, %s286
      %p288 = scmp.eq.s32.totalorder %s36, 0
      %p289 = por %p287, %p288
      %s291 = sadd.s32 %s290, 1
      %p294 = scmp.eq.s32.totalorder %s30, 3
      %p295 = scmp.ne.s32.totalorder %s290, %s292
      %p296 = scmp.eq.s32.totalorder %s30, 0
      %p297 = por %p295, %p296
      %p298 = scmp.ne.s32.totalorder %s290, %s292
      %p299 = scmp.eq.s32.totalorder %s35, 3
      %p300 = por %p298, %p299
      %p301 = scmp.ne.s32.totalorder %s292, %s293
      %p302 = scmp.eq.s32.totalorder %s35, 0
      %p303 = por %p301, %p302
      %p304 = scmp.ne.s32.totalorder %s292, %s293
      %p305 = scmp.eq.s32.totalorder %s36, 3
      %p306 = por %p304, %p305
      %p308 = scmp.ne.s32.totalorder %s293, %s307
      %p309 = scmp.eq.s32.totalorder %s36, 0
      %p310 = por %p308, %p309
      %s312 = sadd.s32 %s311, 1
      %p315 = scmp.eq.s32.totalorder %s30, 3
      %p316 = scmp.ne.s32.totalorder %s311, %s313
      %p317 = scmp.eq.s32.totalorder %s30, 0
      %p318 = por %p316, %p317
      %p319 = scmp.ne.s32.totalorder %s311, %s313
      %p320 = scmp.eq.s32.totalorder %s35, 3
      %p321 = por %p319, %p320
      %p322 = scmp.ne.s32.totalorder %s313, %s314
      %p323 = scmp.eq.s32.totalorder %s35, 0
      %p324 = por %p322, %p323
      %p325 = scmp.ne.s32.totalorder %s313, %s314
      %p326 = scmp.eq.s32.totalorder %s36, 3
      %p327 = por %p325, %p326
      %p329 = scmp.ne.s32.totalorder %s314, %s328
      %p330 = scmp.eq.s32.totalorder %s36, 0
      %p331 = por %p329, %p330
      %s333 = sadd.s32 %s332, 1
      %p336 = scmp.eq.s32.totalorder %s30, 3
      %p337 = scmp.ne.s32.totalorder %s332, %s334
      %p338 = scmp.eq.s32.totalorder %s30, 0
      %p339 = por %p337, %p338
      %p340 = scmp.ne.s32.totalorder %s332, %s334
      %p341 = scmp.eq.s32.totalorder %s35, 3
      %p342 = por %p340, %p341
      %p343 = scmp.ne.s32.totalorder %s334, %s335
      %p344 = scmp.eq.s32.totalorder %s35, 0
      %p345 = por %p343, %p344
      %p346 = scmp.ne.s32.totalorder %s334, %s335
      %p347 = scmp.eq.s32.totalorder %s36, 3
      %p348 = por %p346, %p347
      %p350 = scmp.ne.s32.totalorder %s335, %s349
      %p351 = scmp.eq.s32.totalorder %s36, 0
      %p352 = por %p350, %p351
      %s354 = sadd.s32 %s353, 1
      %p357 = scmp.eq.s32.totalorder %s30, 3
      %p358 = scmp.ne.s32.totalorder %s353, %s355
      %p359 = scmp.eq.s32.totalorder %s30, 0
      %p360 = por %p358, %p359
      %p361 = scmp.ne.s32.totalorder %s353, %s355
      %p362 = scmp.eq.s32.totalorder %s35, 3
      %p363 = por %p361, %p362
      %p364 = scmp.ne.s32.totalorder %s355, %s356
      %p365 = scmp.eq.s32.totalorder %s35, 0
      %p366 = por %p364, %p365
      %p367 = scmp.ne.s32.totalorder %s355, %s356
      %p368 = scmp.eq.s32.totalorder %s36, 3
      %p369 = por %p367, %p368
      %p371 = scmp.ne.s32.totalorder %s356, %s370
      %p372 = scmp.eq.s32.totalorder %s36, 0
      %p373 = por %p371, %p372
      %s375 = sadd.s32 %s374, 1
      %p378 = scmp.eq.s32.totalorder %s30, 3
      %p379 = scmp.ne.s32.totalorder %s374, %s376
      %p380 = scmp.eq.s32.totalorder %s30, 0
      %p381 = por %p379, %p380
      %p382 = scmp.ne.s32.totalorder %s374, %s376
      %p383 = scmp.eq.s32.totalorder %s35, 3
      %p384 = por %p382, %p383
      %p385 = scmp.ne.s32.totalorder %s376, %s377
      %p386 = scmp.eq.s32.totalorder %s35, 0
      %p387 = por %p385, %p386
      %p388 = scmp.ne.s32.totalorder %s376, %s377
      %p389 = scmp.eq.s32.totalorder %s36, 3
      %p390 = por %p388, %p389
      %p392 = scmp.ne.s32.totalorder %s377, %s391
      %p393 = scmp.eq.s32.totalorder %s36, 0
      %p394 = por %p392, %p393
      %p395 = scmp.le.s32.totalorder 1, %s30
      %p396 = scmp.lt.s32.totalorder %s30, 5
      %p397 = pnand %p395, %p396
      %p398 = pneg %p397
      // Predicated region
      $region9: #{nf_forward.1} parent=5 // pred_check
        _
      $region10: #{nf_forward.1} parent=5 // pred_check_branch
        %400 = sbr.rel (%p397) target = $region12
      $region11: #{nf_forward.1} parent=5 // pred_region
        %s401 = ssub.s32 %s30, 1
        // Predicated region
        $region13: #{nf_forward.1} parent=11 // pred_check
          %p402 = pneg %p51
        $region14: #{nf_forward.1} parent=11 // pred_check_branch
          %404 = sbr.rel (%p402) target = $region16
        $region15: #{nf_forward.1} parent=11 // pred_region
          _
        $region16: #{nf_forward.1} parent=11 // pred_fallthru
          _
        // Predicated region
        $region17: #{nf_forward.1} parent=11 // pred_check
          %p405 = pneg %p72
        $region18: #{nf_forward.1} parent=11 // pred_check_branch
          %407 = sbr.rel (%p405) target = $region20
        $region19: #{nf_forward.1} parent=11 // pred_region
          _
        $region20: #{nf_forward.1} parent=11 // pred_fallthru
          _
        // Predicated region
        $region21: #{nf_forward.1} parent=11 // pred_check
          %p408 = pneg %p261
        $region22: #{nf_forward.1} parent=11 // pred_check_branch
          %410 = sbr.rel (%p408) target = $region24
        $region23: #{nf_forward.1} parent=11 // pred_region
          _
        $region24: #{nf_forward.1} parent=11 // pred_fallthru
          _
        // Predicated region
        $region25: #{nf_forward.1} parent=11 // pred_check
          %p411 = pneg %p282
        $region26: #{nf_forward.1} parent=11 // pred_check_branch
          %413 = sbr.rel (%p411) target = $region28
        $region27: #{nf_forward.1} parent=11 // pred_region
          _
        $region28: #{nf_forward.1} parent=11 // pred_fallthru
          _
        // Predicated region
        $region29: #{nf_forward.1} parent=11 // pred_check
          %p414 = pneg %p303
        $region30: #{nf_forward.1} parent=11 // pred_check_branch
          %416 = sbr.rel (%p414) target = $region32
        $region31: #{nf_forward.1} parent=11 // pred_region
          _
        $region32: #{nf_forward.1} parent=11 // pred_fallthru
          _
        // Predicated region
        $region33: #{nf_forward.1} parent=11 // pred_check
          %p417 = pneg %p324
        $region34: #{nf_forward.1} parent=11 // pred_check_branch
          %419 = sbr.rel (%p417) target = $region36
        $region35: #{nf_forward.1} parent=11 // pred_region
          _
        $region36: #{nf_forward.1} parent=11 // pred_fallthru
          _
      $region12: #{nf_forward.1} parent=5 // pred_fallthru
        _
      %p420 = scmp.lt.s32.totalorder %s30, 4
      // Predicated region
      $region37: #{nf_forward.1} parent=5 // pred_check
        %p421 = pneg %p420
      $region38: #{nf_forward.1} parent=5 // pred_check_branch
        %423 = sbr.rel (%p421) target = $region40
      $region39: #{nf_forward.1} parent=5 // pred_region
        // Predicated region
        $region41: #{nf_forward.1} parent=39 // pred_check
          %p424 = pneg %p94
        $region42: #{nf_forward.1} parent=39 // pred_check_branch
          %426 = sbr.rel (%p424) target = $region44
        $region43: #{nf_forward.1} parent=39 // pred_region
          %s427 = ssub.s32 3, %s30
          %p428 = scmp.lt.s32.totalorder %s427, 3
          %s429 = scalar_select %p428, %s427, 3
          %s430 = smul.addr %s429, 8
          %s431 = scalar_lea.vmem %s2, %s430
          %s432 = ssub.s32 3, %s30
        $region44: #{nf_forward.1} parent=39 // pred_fallthru
          _
        // Predicated region
        $region45: #{nf_forward.1} parent=39 // pred_check
          %p433 = pneg %p122
        $region46: #{nf_forward.1} parent=39 // pred_check_branch
          %435 = sbr.rel (%p433) target = $region48
        $region47: #{nf_forward.1} parent=39 // pred_region
          %s436 = sand.u32 %s112, 1
          %s437 = scalar_lea.sflag [#allocation4], %s436
          %s438 = sand.u32 %s112, 1
          %s439 = scalar_lea.vmem [#allocation3], %s438
          %s440 = ssub.s32 3, %s30
          %s442 = ssub.s32 16, 16
          %443 = vsyncadd %s437, %s442
          %s444 = smul.addr %s440, 16
          %s445 = scalar_lea.hbm %s3, %s444
          %s447 = sshll.u32 %s439, 4
          %s448 = int_to_ptr.vmem [resolvable:$true] %s447
          %450 = dma.hbm_to_vmem [thread:$0]  %s445, 16, %s448, %s437
        $region48: #{nf_forward.1} parent=39 // pred_fallthru
          _
        // Predicated region
        $region49: #{nf_forward.1} parent=39 // pred_check
          %p451 = pneg %p150
        $region50: #{nf_forward.1} parent=39 // pred_check_branch
          %453 = sbr.rel (%p451) target = $region52
        $region51: #{nf_forward.1} parent=39 // pred_region
          %s454 = ssub.s32 3, %s30
          %p455 = scmp.lt.s32.totalorder %s454, 3
          %s456 = scalar_select %p455, %s454, 3
          %s457 = smul.addr %s456, 8
          %s458 = smul.addr %s457, 8
          %s459 = scalar_lea.vmem %s4, %s458
          %s460 = ssub.s32 3, %s30
        $region52: #{nf_forward.1} parent=39 // pred_fallthru
          _
        // Predicated region
        $region53: #{nf_forward.1} parent=39 // pred_check
          %p461 = pneg %p178
        $region54: #{nf_forward.1} parent=39 // pred_check_branch
          %463 = sbr.rel (%p461) target = $region56
        $region55: #{nf_forward.1} parent=39 // pred_region
          %s464 = sand.u32 %s168, 1
          %s465 = scalar_lea.sflag [#allocation7], %s464
          %s466 = sand.u32 %s168, 1
          %s467 = scalar_lea.vmem [#allocation6], %s466
          %s468 = ssub.s32 3, %s30
          %s470 = ssub.s32 16, 16
          %471 = vsyncadd %s465, %s470
          %s472 = smul.addr %s468, 16
          %s473 = scalar_lea.hbm %s5, %s472
          %s475 = sshll.u32 %s467, 4
          %s476 = int_to_ptr.vmem [resolvable:$true] %s475
          %478 = dma.hbm_to_vmem [thread:$0]  %s473, 16, %s476, %s465
        $region56: #{nf_forward.1} parent=39 // pred_fallthru
          _
        // Predicated region
        $region57: #{nf_forward.1} parent=39 // pred_check
          %p479 = pneg %p206
        $region58: #{nf_forward.1} parent=39 // pred_check_branch
          %481 = sbr.rel (%p479) target = $region60
        $region59: #{nf_forward.1} parent=39 // pred_region
          %s482 = ssub.s32 3, %s30
          %p483 = scmp.lt.s32.totalorder %s482, 3
          %s484 = scalar_select %p483, %s482, 3
          %s485 = smul.addr %s484, 8
          %s486 = smul.addr %s485, 8
          %s487 = scalar_lea.vmem %s6, %s486
          %s488 = ssub.s32 3, %s30
        $region60: #{nf_forward.1} parent=39 // pred_fallthru
          _
        // Predicated region
        $region61: #{nf_forward.1} parent=39 // pred_check
          %p489 = pneg %p234
        $region62: #{nf_forward.1} parent=39 // pred_check_branch
          %491 = sbr.rel (%p489) target = $region64
        $region63: #{nf_forward.1} parent=39 // pred_region
          %s492 = ssub.s32 3, %s30
          %p493 = scmp.lt.s32.totalorder %s492, 3
          %s494 = scalar_select %p493, %s492, 3
          %s495 = scalar_lea.vmem %s7, %s494
          %s496 = ssub.s32 3, %s30
        $region64: #{nf_forward.1} parent=39 // pred_fallthru
          _
      $region40: #{nf_forward.1} parent=5 // pred_fallthru
        _
      %p497 = scmp.le.s32.totalorder 1, %s30
      %p498 = scmp.lt.s32.totalorder %s30, 5
      %p499 = pnand %p497, %p498
      %p500 = pneg %p499
      // Predicated region
      $region65: #{nf_forward.1} parent=5 // pred_check
        _
      $region66: #{nf_forward.1} parent=5 // pred_check_branch
        %502 = sbr.rel (%p499) target = $region68
      $region67: #{nf_forward.1} parent=5 // pred_region
        %s503 = ssub.s32 %s30, 1
        %s504 = sand.u32 %s115, 1
        %s505 = scalar_lea.sflag [#allocation4], %s504
        %s506 = sand.u32 %s115, 1
        %s507 = scalar_lea.vmem [#allocation3], %s506
        // Predicated region
        $region69: #{nf_forward.1} parent=67 // pred_check
          %p508 = pneg %p128
        $region70: #{nf_forward.1} parent=67 // pred_check_branch
          %510 = sbr.rel (%p508) target = $region72
        $region71: #{nf_forward.1} parent=67 // pred_region
          %511 = dma.done %s505, 16
        $region72: #{nf_forward.1} parent=67 // pred_fallthru
          _
        %s512 = sand.u32 %s171, 1
        %s513 = scalar_lea.sflag [#allocation7], %s512
        %s514 = sand.u32 %s171, 1
        %s515 = scalar_lea.vmem [#allocation6], %s514
        // Predicated region
        $region73: #{nf_forward.1} parent=67 // pred_check
          %p516 = pneg %p184
        $region74: #{nf_forward.1} parent=67 // pred_check_branch
          %518 = sbr.rel (%p516) target = $region76
        $region75: #{nf_forward.1} parent=67 // pred_region
          %519 = dma.done %s513, 16
        $region76: #{nf_forward.1} parent=67 // pred_fallthru
          _
        %p520 = pneg %p51
        %p521 = pneg %p48
        %p522 = pneg %p72
        %p523 = pneg %p69
        %s524 = ssub.s32 3, %s35
        %p525 = scmp.lt.s32.totalorder %s524, 3
        %s526 = scalar_select %p525, %s524, 3
        %s527 = smul.addr %s526, 8
        %s528 = scalar_lea.vmem %s2, %s527
        %p529 = pneg %p100
        %p530 = pneg %p97
        %s531 = sand.u32 %s115, 1
        %s532 = scalar_lea.sflag [#allocation4], %s531
        %s533 = sand.u32 %s115, 1
        %s534 = scalar_lea.vmem [#allocation3], %s533
        %p535 = pneg %p128
        %p536 = pneg %p125
        %s537 = ssub.s32 3, %s35
        %p538 = scmp.lt.s32.totalorder %s537, 3
        %s539 = scalar_select %p538, %s537, 3
        %s540 = smul.addr %s539, 8
        %s541 = smul.addr %s540, 8
        %s542 = scalar_lea.vmem %s4, %s541
        %p543 = pneg %p156
        %p544 = pneg %p153
        %s545 = sand.u32 %s171, 1
        %s546 = scalar_lea.sflag [#allocation7], %s545
        %s547 = sand.u32 %s171, 1
        %s548 = scalar_lea.vmem [#allocation6], %s547
        %p549 = pneg %p184
        %p550 = pneg %p181
        %s551 = ssub.s32 3, %s35
        %p552 = scmp.lt.s32.totalorder %s551, 3
        %s553 = scalar_select %p552, %s551, 3
        %s554 = smul.addr %s553, 8
        %s555 = smul.addr %s554, 8
        %s556 = scalar_lea.vmem %s6, %s555
        %p557 = pneg %p212
        %p558 = pneg %p209
        %s559 = ssub.s32 3, %s35
        %p560 = scmp.lt.s32.totalorder %s559, 3
        %s561 = scalar_select %p560, %s559, 3
        %s562 = scalar_lea.vmem %s7, %s561
        %p563 = pneg %p240
        %p564 = pneg %p237
        %p565 = pneg %p261
        %p566 = pneg %p258
        %p567 = pneg %p282
        %p568 = pneg %p279
        %p569 = pneg %p303
        %p570 = pneg %p300
        %p571 = pneg %p324
        %p572 = pneg %p321
        %p573 = pneg %p345
        %p574 = pneg %p342
        %p575 = pneg %p366
        %p576 = pneg %p363
        %p577 = pneg %p387
        %p578 = pneg %p384
        %s579 = ssub.s32 3, %s35
        %p580 = scmp.lt.s32.totalorder %s579, 3
        %s581 = scalar_select %p580, %s579, 3
        %s582 = smul.addr %s581, 8
        %s583 = scalar_lea.vmem %s2, %s582
        %s584 = ssub.s32 3, %s35
        %s585 = ssub.s32 3, %s35
        %s586 = ssub.s32 3, %s35
        %p587 = scmp.lt.s32.totalorder %s586, 3
        %s588 = scalar_select %p587, %s586, 3
        %s589 = smul.addr %s588, 8
        %s590 = smul.addr %s589, 8
        %s591 = scalar_lea.vmem %s4, %s590
        %s592 = ssub.s32 3, %s35
        %s593 = ssub.s32 3, %s35
        %s594 = ssub.s32 3, %s35
        %p595 = scmp.lt.s32.totalorder %s594, 3
        %s596 = scalar_select %p595, %s594, 3
        %s597 = smul.addr %s596, 8
        %s598 = smul.addr %s597, 8
        %s599 = scalar_lea.vmem %s6, %s598
        %s600 = ssub.s32 3, %s35
        %s601 = ssub.s32 3, %s35
        %p602 = scmp.lt.s32.totalorder %s601, 3
        %s603 = scalar_select %p602, %s601, 3
        %s604 = scalar_lea.vmem %s7, %s603
        %s605 = ssub.s32 3, %s35
        %p606 = scmp.eq.s32.totalorder %s35, 0
        // Predicated region
        $region77: #{nf_forward.1} parent=67 // pred_check
          %p607 = pneg %p606
        $region78: #{nf_forward.1} parent=67 // pred_check_branch
          %609 = sbr.rel (%p607) target = $region80
        $region79: #{nf_forward.1} parent=67 // pred_region
          %v610 = vld [vmem:[%s0] sm:$0xff]
          %vm611 = vcmask 130048
          %612 = vst.msk [vmem:[#allocation8] sm:$0xff] %vm611, %v610
        $region80: #{nf_forward.1} parent=67 // pred_fallthru
          _
        %s613 = ssub.s32 3, %s35
        %p614 = scmp.lt.s32.totalorder %s613, 0
        %s615 = ssub.s32 0, %s613
        %s616 = scalar_select %p614, %s615, %s613
        %s617 = sand.u32 %s616, 1
        %s618 = ssub.s32 0, %s617
        %s619 = scalar_select %p614, %s618, %s617
        %p620 = scmp.ne.s32.totalorder %s619, 0
        %p621 = scmp.lt.s32.totalorder %s619, 0
        %p622 = pnand %p621, %p620
        %p623 = pneg %p622
        %s624 = sadd.s32 %s619, 2
        %s625 = scalar_select %p623, %s624, %s619
        %p626 = scmp.eq.s32.totalorder %s625, 0
        %v627 = vld [vmem:[#allocation8] sm:$0xff]
        %s628 = scalar_select %p626, 1, 0
        %v629 = vstv %s628
        %vm630 = vcmp.eq.s32.totalorder %v629, 1
        %632 = vrot.lane.b32.xlu0 %v627, 120
        %v633 = vpop.permute.xlu0 %632
        %v635 = vsel %vm630, %v627, %v633
        %636 = vrot.lane.b32.xlu0 %v627, 8
        %v637 = vpop.permute.xlu0 %636
        %v639 = vsel %vm630, %v627, %v637
        %v640 = vld [vmem:[%s583] sm:$0xff]
        %v641 = vld [vmem:[%s507] sm:$0x1]
        %v642 = vld [vmem:[%s591] sm:$0xff]
        %v643 = vld [vmem:[%s591 + $0x8] sm:$0xff]
        %v644 = vld [vmem:[%s591 + $0x10] sm:$0xff]
        %v645 = vld [vmem:[%s591 + $0x18] sm:$0xff]
        %v646 = vld [vmem:[%s591 + $0x20] sm:$0xff]
        %v647 = vld [vmem:[%s591 + $0x28] sm:$0xff]
        %v648 = vld [vmem:[%s591 + $0x30] sm:$0xff]
        %v649 = vld [vmem:[%s591 + $0x38] sm:$0xff]
        %v650 = vld [vmem:[%s515] sm:$0x1]
        %v651 = vld [vmem:[%s599] sm:$0xff]
        %v652 = vld [vmem:[%s599 + $0x8] sm:$0xff]
        %v653 = vld [vmem:[%s599 + $0x10] sm:$0xff]
        %v654 = vld [vmem:[%s599 + $0x18] sm:$0xff]
        %v655 = vld [vmem:[%s599 + $0x20] sm:$0xff]
        %v656 = vld [vmem:[%s599 + $0x28] sm:$0xff]
        %v657 = vld [vmem:[%s599 + $0x30] sm:$0xff]
        %v658 = vld [vmem:[%s599 + $0x38] sm:$0xff]
        %v659 = vld [vmem:[%s604] sm:$0x1]
        %v661 = vlaneseq
        %v662 = vshrl.u32 %v661, 7
        %v663 = vsub.s32 0, %v662
        %v664 = vrot.slane %v641, %v663
        %vm666 = vcmask 64512
        %v668 = vsel %vm666, %v635, 0
        %670 = vmatprep.subr.mxu0 0.0
        %671 = vmatpush1.msra.mxu0 %v640
        %672 = vmatprep.subr.mxu0 0.0
        %673 = vmatpush1.msra.mxu0 0.0
        %674 = vmatprep.subr.mxu0 0.0
        %675 = vmatpush1.msra.mxu0 0.0
        %676 = vmatprep.subr.mxu0 0.0
        %677 = vmatpush1.msra.mxu0 0.0
        %678 = vmatprep.subr.mxu0 0.0
        %679 = vmatpush1.msra.mxu0 0.0
        %680 = vmatprep.subr.mxu0 0.0
        %681 = vmatpush1.msra.mxu0 0.0
        %682 = vmatprep.subr.mxu0 0.0
        %683 = vmatpush1.msra.mxu0 0.0
        %684 = vmatprep.subr.mxu0 0.0
        %685 = vmatpush1.msra.mxu0 0.0
        %686 = vmatprep.subr.mxu0 0.0
        %687 = vmatpush1.msra.mxu0 0.0
        %688 = vmatprep.subr.mxu0 0.0
        %689 = vmatpush1.msra.mxu0 0.0
        %690 = vmatprep.subr.mxu0 0.0
        %691 = vmatpush1.msra.mxu0 0.0
        %692 = vmatprep.subr.mxu0 0.0
        %693 = vmatpush1.msra.mxu0 0.0
        %694 = vmatprep.subr.mxu0 0.0
        %695 = vmatpush1.msra.mxu0 0.0
        %696 = vmatprep.subr.mxu0 0.0
        %697 = vmatpush1.msra.mxu0 0.0
        %698 = vmatprep.subr.mxu0 0.0
        %699 = vmatpush1.msra.mxu0 0.0
        %700 = vmatprep.subr.mxu0 0.0
        %701 = vmatpush1.msra.mxu0 0.0
        %702 = vmatprep.subr.mxu0 0.0
        %703 = vmatpush1.msra.mxu0 0.0
        %704 = vmatprep.subr.mxu0 0.0
        %705 = vmatpush1.msra.mxu0 0.0
        %706 = vmatprep.subr.mxu0 0.0
        %707 = vmatpush1.msra.mxu0 0.0
        %708 = vmatprep.subr.mxu0 0.0
        %709 = vmatpush1.msra.mxu0 0.0
        %710 = vmatprep.subr.mxu0 0.0
        %711 = vmatpush1.msra.mxu0 0.0
        %712 = vmatprep.subr.mxu0 0.0
        %713 = vmatpush1.msra.mxu0 0.0
        %714 = vmatprep.subr.mxu0 0.0
        %715 = vmatpush1.msra.mxu0 0.0
        %716 = vmatprep.subr.mxu0 0.0
        %717 = vmatpush1.msra.mxu0 0.0
        %718 = vmatprep.subr.mxu0 0.0
        %719 = vmatpush1.msra.mxu0 0.0
        %720 = vmatprep.subr.mxu0 0.0
        %721 = vmatpush1.msra.mxu0 0.0
        %722 = vmatprep.subr.mxu0 0.0
        %723 = vmatpush1.msra.mxu0 0.0
        %724 = vmatprep.subr.mxu0 0.0
        %725 = vmatpush1.msra.mxu0 0.0
        %726 = vmatprep.subr.mxu0 0.0
        %727 = vmatpush1.msra.mxu0 0.0
        %728 = vmatprep.subr.mxu0 0.0
        %729 = vmatpush1.msra.mxu0 0.0
        %730 = vmatprep.subr.mxu0 0.0
        %731 = vmatpush1.msra.mxu0 0.0
        %732 = vmatprep.subr.mxu0 0.0
        %733 = vmatpush1.msra.mxu0 0.0
        %734 = vmatprep.mubr.f32.mxu0 0.0
        %735 = vmatmul.mubr.f32.gmra.mrb[0].mxu0 %v668
        %v736 = vpop.f32.mrb[0].mxu0
        %v737 = vadd.f32 %v664, %v736
        %v738 = vpop.f32.mrb[0].mxu0
        %739 = vdwg.mxu0
        %vm740 = vcmp.gt.f32.partialorder %v737, 0.0
        %v741 = vmul.f32 %v737, 0.01
        %v742 = vsel %vm740, %v737, %v741
        %v744 = vlaneseq
        %v745 = vshrl.u32 %v744, 7
        %v746 = vsub.s32 0, %v745
        %v747 = vrot.slane %v650, %v746
        %vm749 = vcmask 523264
        %v751 = vsel %vm749, %v742, 0
        %753 = vmatprep.subr.mxu0 0.0
        %754 = vmatpush1.msra.mxu0 %v642
        %755 = vmatprep.subr.mxu0 0.0
        %756 = vmatpush1.msra.mxu0 %v643
        %757 = vmatprep.subr.mxu0 0.0
        %758 = vmatpush1.msra.mxu0 %v644
        %759 = vmatprep.subr.mxu0 0.0
        %760 = vmatpush1.msra.mxu0 %v645
        %761 = vmatprep.subr.mxu0 0.0
        %762 = vmatpush1.msra.mxu0 %v646
        %763 = vmatprep.subr.mxu0 0.0
        %764 = vmatpush1.msra.mxu0 %v647
        %765 = vmatprep.subr.mxu0 0.0
        %766 = vmatpush1.msra.mxu0 %v648
        %767 = vmatprep.subr.mxu0 0.0
        %768 = vmatpush1.msra.mxu0 %v649
        %769 = vmatprep.subr.mxu0 0.0
        %770 = vmatpush1.msra.mxu0 0.0
        %771 = vmatprep.subr.mxu0 0.0
        %772 = vmatpush1.msra.mxu0 0.0
        %773 = vmatprep.subr.mxu0 0.0
        %774 = vmatpush1.msra.mxu0 0.0
        %775 = vmatprep.subr.mxu0 0.0
        %776 = vmatpush1.msra.mxu0 0.0
        %777 = vmatprep.subr.mxu0 0.0
        %778 = vmatpush1.msra.mxu0 0.0
        %779 = vmatprep.subr.mxu0 0.0
        %780 = vmatpush1.msra.mxu0 0.0
        %781 = vmatprep.subr.mxu0 0.0
        %782 = vmatpush1.msra.mxu0 0.0
        %783 = vmatprep.subr.mxu0 0.0
        %784 = vmatpush1.msra.mxu0 0.0
        %785 = vmatprep.subr.mxu0 0.0
        %786 = vmatpush1.msra.mxu0 0.0
        %787 = vmatprep.subr.mxu0 0.0
        %788 = vmatpush1.msra.mxu0 0.0
        %789 = vmatprep.subr.mxu0 0.0
        %790 = vmatpush1.msra.mxu0 0.0
        %791 = vmatprep.subr.mxu0 0.0
        %792 = vmatpush1.msra.mxu0 0.0
        %793 = vmatprep.subr.mxu0 0.0
        %794 = vmatpush1.msra.mxu0 0.0
        %795 = vmatprep.subr.mxu0 0.0
        %796 = vmatpush1.msra.mxu0 0.0
        %797 = vmatprep.subr.mxu0 0.0
        %798 = vmatpush1.msra.mxu0 0.0
        %799 = vmatprep.subr.mxu0 0.0
        %800 = vmatpush1.msra.mxu0 0.0
        %801 = vmatprep.subr.mxu0 0.0
        %802 = vmatpush1.msra.mxu0 0.0
        %803 = vmatprep.subr.mxu0 0.0
        %804 = vmatpush1.msra.mxu0 0.0
        %805 = vmatprep.subr.mxu0 0.0
        %806 = vmatpush1.msra.mxu0 0.0
        %807 = vmatprep.subr.mxu0 0.0
        %808 = vmatpush1.msra.mxu0 0.0
        %809 = vmatprep.subr.mxu0 0.0
        %810 = vmatpush1.msra.mxu0 0.0
        %811 = vmatprep.subr.mxu0 0.0
        %812 = vmatpush1.msra.mxu0 0.0
        %813 = vmatprep.subr.mxu0 0.0
        %814 = vmatpush1.msra.mxu0 0.0
        %815 = vmatprep.subr.mxu0 0.0
        %816 = vmatpush1.msra.mxu0 0.0
        %817 = vmatprep.mubr.f32.mxu0 0.0
        %818 = vmatmul.mubr.f32.gmra.mrb[0].mxu0 %v751
        %v819 = vpop.f32.mrb[0].mxu0
        %v820 = vadd.f32 %v747, %v819
        %v821 = vpop.f32.mrb[0].mxu0
        %822 = vdwg.mxu0
        %vm823 = vcmp.gt.f32.partialorder %v820, 0.0
        %v824 = vmul.f32 %v820, 0.01
        %v825 = vsel %vm823, %v820, %v824
        %v827 = vlaneseq
        %v828 = vshrl.u32 %v827, 7
        %v829 = vsub.s32 0, %v828
        %v830 = vrot.slane %v659, %v829
        %v833 = vsel %vm749, %v825, 0
        %835 = vmatprep.subr.mxu0 0.0
        %836 = vmatpush1.msra.mxu0 %v651
        %837 = vmatprep.subr.mxu0 0.0
        %838 = vmatpush1.msra.mxu0 %v652
        %839 = vmatprep.subr.mxu0 0.0
        %840 = vmatpush1.msra.mxu0 %v653
        %841 = vmatprep.subr.mxu0 0.0
        %842 = vmatpush1.msra.mxu0 %v654
        %843 = vmatprep.subr.mxu0 0.0
        %844 = vmatpush1.msra.mxu0 %v655
        %845 = vmatprep.subr.mxu0 0.0
        %846 = vmatpush1.msra.mxu0 %v656
        %847 = vmatprep.subr.mxu0 0.0
        %848 = vmatpush1.msra.mxu0 %v657
        %849 = vmatprep.subr.mxu0 0.0
        %850 = vmatpush1.msra.mxu0 %v658
        %851 = vmatprep.subr.mxu0 0.0
        %852 = vmatpush1.msra.mxu0 0.0
        %853 = vmatprep.subr.mxu0 0.0
        %854 = vmatpush1.msra.mxu0 0.0
        %855 = vmatprep.subr.mxu0 0.0
        %856 = vmatpush1.msra.mxu0 0.0
        %857 = vmatprep.subr.mxu0 0.0
        %858 = vmatpush1.msra.mxu0 0.0
        %859 = vmatprep.subr.mxu0 0.0
        %860 = vmatpush1.msra.mxu0 0.0
        %861 = vmatprep.subr.mxu0 0.0
        %862 = vmatpush1.msra.mxu0 0.0
        %863 = vmatprep.subr.mxu0 0.0
        %864 = vmatpush1.msra.mxu0 0.0
        %865 = vmatprep.subr.mxu0 0.0
        %866 = vmatpush1.msra.mxu0 0.0
        %867 = vmatprep.subr.mxu0 0.0
        %868 = vmatpush1.msra.mxu0 0.0
        %869 = vmatprep.subr.mxu0 0.0
        %870 = vmatpush1.msra.mxu0 0.0
        %871 = vmatprep.subr.mxu0 0.0
        %872 = vmatpush1.msra.mxu0 0.0
        %873 = vmatprep.subr.mxu0 0.0
        %874 = vmatpush1.msra.mxu0 0.0
        %875 = vmatprep.subr.mxu0 0.0
        %876 = vmatpush1.msra.mxu0 0.0
        %877 = vmatprep.subr.mxu0 0.0
        %878 = vmatpush1.msra.mxu0 0.0
        %879 = vmatprep.subr.mxu0 0.0
        %880 = vmatpush1.msra.mxu0 0.0
        %881 = vmatprep.subr.mxu0 0.0
        %882 = vmatpush1.msra.mxu0 0.0
        %883 = vmatprep.subr.mxu0 0.0
        %884 = vmatpush1.msra.mxu0 0.0
        %885 = vmatprep.subr.mxu0 0.0
        %886 = vmatpush1.msra.mxu0 0.0
        %887 = vmatprep.subr.mxu0 0.0
        %888 = vmatpush1.msra.mxu0 0.0
        %889 = vmatprep.subr.mxu0 0.0
        %890 = vmatpush1.msra.mxu0 0.0
        %891 = vmatprep.subr.mxu0 0.0
        %892 = vmatpush1.msra.mxu0 0.0
        %893 = vmatprep.subr.mxu0 0.0
        %894 = vmatpush1.msra.mxu0 0.0
        %895 = vmatprep.subr.mxu0 0.0
        %896 = vmatpush1.msra.mxu0 0.0
        %897 = vmatprep.subr.mxu0 0.0
        %898 = vmatpush1.msra.mxu0 0.0
        %899 = vmatprep.mubr.f32.mxu0 0.0
        %900 = vmatmul.mubr.f32.gmra.mrb[0].mxu0 %v833
        %v901 = vpop.f32.mrb[0].mxu0
        %v902 = vadd.f32 %v830, %v901
        %v903 = vpop.f32.mrb[0].mxu0
        %904 = vdwg.mxu0
        %v905 = vtanh.pop %v902
        %v906 = vsub.f32 %v639, %v902
        %v907 = vsub.f32 0.0, %v905
        %v908 = vmul.f32 %v907, 1.442695
        %v909 = vpow.pop %v908
        %911 = vrot.lane.b32.xlu0 %v909, 8
        %v912 = vpop.permute.xlu0 %911
        %v914 = vmul.f32 %v906, %v912
        %v915 = vsel %vm666, %v635, %v914
        %917 = vrot.lane.b32.xlu0 %v914, 120
        %v918 = vpop.permute.xlu0 %917
        %920 = vrot.lane.b32.xlu0 %v635, 8
        %v921 = vpop.permute.xlu0 %920
        %v923 = vsel %vm666, %v918, %v921
        %v924 = vsel %vm630, %v915, %v923
        %vm925 = vcmask 130048
        %926 = vst.msk [vmem:[#allocation8] sm:$0xff] %vm925, %v924
        %v927 = vsel %vm666, %v905, 0.0
        %928 = vadd.xlane.f32.xlu0 %v927
        %v929 = vpop.xlane.xlu0 %928
        %s930 = smul.u32 %s35, 8
        %s931 = scalar_lea.vmem %s13, %s930
        %vm932 = vcmask 7168
        %933 = vst.msk [vmem:[%s931] sm:$0xff] %vm932, %v929
        %p934 = scmp.eq.s32.totalorder %s35, 3
        // Predicated region
        $region81: #{nf_forward.1} parent=67 // pred_check
          %p935 = pneg %p934
        $region82: #{nf_forward.1} parent=67 // pred_check_branch
          %937 = sbr.rel (%p935) target = $region84
        $region83: #{nf_forward.1} parent=67 // pred_region
          %v938 = vld [vmem:[%s1] sm:$0xff]
          %v939 = vld [vmem:[%s1 + $0x8] sm:$0xff]
          %v940 = vld [vmem:[%s8] sm:$0xff]
          %v941 = vld [vmem:[%s8 + $0x8] sm:$0xff]
          %v942 = vld [vmem:[%s8 + $0x10] sm:$0xff]
          %v943 = vld [vmem:[%s8 + $0x18] sm:$0xff]
          %v944 = vld [vmem:[%s9] sm:$0x1]
          %v946 = vlaneseq
          %v947 = vshrl.u32 %v946, 7
          %v948 = vsub.s32 0, %v947
          %v949 = vrot.slane %v944, %v948
          %vm951 = vcmask 261120
          %v953 = vsel %vm951, %v938, 0
          %v956 = vsel %vm951, %v939, 0
          %958 = vmatprep.subr.mxu0 0.0
          %959 = vmatpush1.msra.mxu0 %v940
          %960 = vmatprep.subr.mxu0 0.0
          %961 = vmatpush1.msra.mxu0 %v941
          %962 = vmatprep.subr.mxu0 0.0
          %963 = vmatpush1.msra.mxu0 %v942
          %964 = vmatprep.subr.mxu0 0.0
          %965 = vmatpush1.msra.mxu0 %v943
          %966 = vmatprep.subr.mxu0 0.0
          %967 = vmatpush1.msra.mxu0 0.0
          %968 = vmatprep.subr.mxu0 0.0
          %969 = vmatpush1.msra.mxu0 0.0
          %970 = vmatprep.subr.mxu0 0.0
          %971 = vmatpush1.msra.mxu0 0.0
          %972 = vmatprep.subr.mxu0 0.0
          %973 = vmatpush1.msra.mxu0 0.0
          %974 = vmatprep.subr.mxu0 0.0
          %975 = vmatpush1.msra.mxu0 0.0
          %976 = vmatprep.subr.mxu0 0.0
          %977 = vmatpush1.msra.mxu0 0.0
          %978 = vmatprep.subr.mxu0 0.0
          %979 = vmatpush1.msra.mxu0 0.0
          %980 = vmatprep.subr.mxu0 0.0
          %981 = vmatpush1.msra.mxu0 0.0
          %982 = vmatprep.subr.mxu0 0.0
          %983 = vmatpush1.msra.mxu0 0.0
          %984 = vmatprep.subr.mxu0 0.0
          %985 = vmatpush1.msra.mxu0 0.0
          %986 = vmatprep.subr.mxu0 0.0
          %987 = vmatpush1.msra.mxu0 0.0
          %988 = vmatprep.subr.mxu0 0.0
          %989 = vmatpush1.msra.mxu0 0.0
          %990 = vmatprep.subr.mxu0 0.0
          %991 = vmatpush1.msra.mxu0 0.0
          %992 = vmatprep.subr.mxu0 0.0
          %993 = vmatpush1.msra.mxu0 0.0
          %994 = vmatprep.subr.mxu0 0.0
          %995 = vmatpush1.msra.mxu0 0.0
          %996 = vmatprep.subr.mxu0 0.0
          %997 = vmatpush1.msra.mxu0 0.0
          %998 = vmatprep.subr.mxu0 0.0
          %999 = vmatpush1.msra.mxu0 0.0
          %1000 = vmatprep.subr.mxu0 0.0
          %1001 = vmatpush1.msra.mxu0 0.0
          %1002 = vmatprep.subr.mxu0 0.0
          %1003 = vmatpush1.msra.mxu0 0.0
          %1004 = vmatprep.subr.mxu0 0.0
          %1005 = vmatpush1.msra.mxu0 0.0
          %1006 = vmatprep.subr.mxu0 0.0
          %1007 = vmatpush1.msra.mxu0 0.0
          %1008 = vmatprep.subr.mxu0 0.0
          %1009 = vmatpush1.msra.mxu0 0.0
          %1010 = vmatprep.subr.mxu0 0.0
          %1011 = vmatpush1.msra.mxu0 0.0
          %1012 = vmatprep.subr.mxu0 0.0
          %1013 = vmatpush1.msra.mxu0 0.0
          %1014 = vmatprep.subr.mxu0 0.0
          %1015 = vmatpush1.msra.mxu0 0.0
          %1016 = vmatprep.subr.mxu0 0.0
          %1017 = vmatpush1.msra.mxu0 0.0
          %1018 = vmatprep.subr.mxu0 0.0
          %1019 = vmatpush1.msra.mxu0 0.0
          %1020 = vmatprep.subr.mxu0 0.0
          %1021 = vmatpush1.msra.mxu0 0.0
          %1022 = vmatprep.mubr.f32.mxu0 0.0
          %1023 = vmatmul.mubr.f32.gmra.mrb[0].mxu0 %v953
          %v1024 = vpop.f32.mrb[0].mxu0
          %v1025 = vadd.f32 %v949, %v1024
          %v1026 = vpop.f32.mrb[0].mxu0
          %1027 = vmatprep.mubr.f32.mxu0 0.0
          %1028 = vmatmul.mubr.f32.gmra.mrb[0].mxu0 %v956
          %v1029 = vpop.f32.mrb[0].mxu0
          %v1030 = vadd.f32 %v949, %v1029
          %v1031 = vpop.f32.mrb[0].mxu0
          %1032 = vdwg.mxu0
          %v1033 = vld [vmem:[%s10] sm:$0xff]
          %v1034 = vld [vmem:[%s10 + $0x8] sm:$0xff]
          %v1035 = vld [vmem:[%s10 + $0x10] sm:$0xff]
          %v1036 = vld [vmem:[%s10 + $0x18] sm:$0xff]
          %v1037 = vld [vmem:[%s10 + $0x20] sm:$0xff]
          %v1038 = vld [vmem:[%s10 + $0x28] sm:$0xff]
          %v1039 = vld [vmem:[%s10 + $0x30] sm:$0xff]
          %v1040 = vld [vmem:[%s10 + $0x38] sm:$0xff]
          %v1041 = vld [vmem:[#allocation2] sm:$0x1]
          %v1043 = vlaneseq
          %v1044 = vshrl.u32 %v1043, 7
          %v1045 = vsub.s32 0, %v1044
          %v1046 = vrot.slane %v1041, %v1045
          %v1049 = vsel %vm749, %v1025, 0
          %v1052 = vsel %vm749, %v1030, 0
          %1054 = vmatprep.subr.mxu0 0.0
          %1055 = vmatpush1.msra.mxu0 %v1033
          %1056 = vmatprep.subr.mxu0 0.0
          %1057 = vmatpush1.msra.mxu0 %v1034
          %1058 = vmatprep.subr.mxu0 0.0
          %1059 = vmatpush1.msra.mxu0 %v1035
          %1060 = vmatprep.subr.mxu0 0.0
          %1061 = vmatpush1.msra.mxu0 %v1036
          %1062 = vmatprep.subr.mxu0 0.0
          %1063 = vmatpush1.msra.mxu0 %v1037
          %1064 = vmatprep.subr.mxu0 0.0
          %1065 = vmatpush1.msra.mxu0 %v1038
          %1066 = vmatprep.subr.mxu0 0.0
          %1067 = vmatpush1.msra.mxu0 %v1039
          %1068 = vmatprep.subr.mxu0 0.0
          %1069 = vmatpush1.msra.mxu0 %v1040
          %1070 = vmatprep.subr.mxu0 0.0
          %1071 = vmatpush1.msra.mxu0 0.0
          %1072 = vmatprep.subr.mxu0 0.0
          %1073 = vmatpush1.msra.mxu0 0.0
          %1074 = vmatprep.subr.mxu0 0.0
          %1075 = vmatpush1.msra.mxu0 0.0
          %1076 = vmatprep.subr.mxu0 0.0
          %1077 = vmatpush1.msra.mxu0 0.0
          %1078 = vmatprep.subr.mxu0 0.0
          %1079 = vmatpush1.msra.mxu0 0.0
          %1080 = vmatprep.subr.mxu0 0.0
          %1081 = vmatpush1.msra.mxu0 0.0
          %1082 = vmatprep.subr.mxu0 0.0
          %1083 = vmatpush1.msra.mxu0 0.0
          %1084 = vmatprep.subr.mxu0 0.0
          %1085 = vmatpush1.msra.mxu0 0.0
          %1086 = vmatprep.subr.mxu0 0.0
          %1087 = vmatpush1.msra.mxu0 0.0
          %1088 = vmatprep.subr.mxu0 0.0
          %1089 = vmatpush1.msra.mxu0 0.0
          %1090 = vmatprep.subr.mxu0 0.0
          %1091 = vmatpush1.msra.mxu0 0.0
          %1092 = vmatprep.subr.mxu0 0.0
          %1093 = vmatpush1.msra.mxu0 0.0
          %1094 = vmatprep.subr.mxu0 0.0
          %1095 = vmatpush1.msra.mxu0 0.0
          %1096 = vmatprep.subr.mxu0 0.0
          %1097 = vmatpush1.msra.mxu0 0.0
          %1098 = vmatprep.subr.mxu0 0.0
          %1099 = vmatpush1.msra.mxu0 0.0
          %1100 = vmatprep.subr.mxu0 0.0
          %1101 = vmatpush1.msra.mxu0 0.0
          %1102 = vmatprep.subr.mxu0 0.0
          %1103 = vmatpush1.msra.mxu0 0.0
          %1104 = vmatprep.subr.mxu0 0.0
          %1105 = vmatpush1.msra.mxu0 0.0
          %1106 = vmatprep.subr.mxu0 0.0
          %1107 = vmatpush1.msra.mxu0 0.0
          %1108 = vmatprep.subr.mxu0 0.0
          %1109 = vmatpush1.msra.mxu0 0.0
          %1110 = vmatprep.subr.mxu0 0.0
          %1111 = vmatpush1.msra.mxu0 0.0
          %1112 = vmatprep.subr.mxu0 0.0
          %1113 = vmatpush1.msra.mxu0 0.0
          %1114 = vmatprep.subr.mxu0 0.0
          %1115 = vmatpush1.msra.mxu0 0.0
          %1116 = vmatprep.subr.mxu0 0.0
          %1117 = vmatpush1.msra.mxu0 0.0
          %1118 = vmatprep.mubr.f32.mxu0 0.0
          %1119 = vmatmul.mubr.f32.gmra.mrb[0].mxu0 %v1049
          %v1120 = vpop.f32.mrb[0].mxu0
          %v1121 = vadd.f32 %v1046, %v1120
          %v1122 = vpop.f32.mrb[0].mxu0
          %1123 = vmatprep.mubr.f32.mxu0 0.0
          %1124 = vmatmul.mubr.f32.gmra.mrb[0].mxu0 %v1052
          %v1125 = vpop.f32.mrb[0].mxu0
          %v1126 = vadd.f32 %v1046, %v1125
          %v1127 = vpop.f32.mrb[0].mxu0
          %1128 = vdwg.mxu0
          %1129 = vst.msk [vmem:[%s14] sm:$0xff] %vm932, %v1121
          %1130 = vst.msk [vmem:[%s14 + $0x8] sm:$0xff] %vm932, %v1126
        $region84: #{nf_forward.1} parent=67 // pred_fallthru
          _
        // Predicated region
        $region85: #{nf_forward.1} parent=67 // pred_check
          %p1131 = pneg %p342
        $region86: #{nf_forward.1} parent=67 // pred_check_branch
          %1133 = sbr.rel (%p1131) target = $region88
        $region87: #{nf_forward.1} parent=67 // pred_region
          %s1135 = ssub.s32 128, 128
          %1136 = vsyncadd [#allocation5], %s1135
          %s1138 = sshll.u32 [#allocation8], 4
          %s1139 = int_to_ptr.vmem [resolvable:$true] %s1138
          %1141 = dma.vmem_to_hbm [thread:$0]  %s1139, 128, %s12, [#allocation5]
        $region88: #{nf_forward.1} parent=67 // pred_fallthru
          _
        // Predicated region
        $region89: #{nf_forward.1} parent=67 // pred_check
          %p1142 = pneg %p363
        $region90: #{nf_forward.1} parent=67 // pred_check_branch
          %1144 = sbr.rel (%p1142) target = $region92
        $region91: #{nf_forward.1} parent=67 // pred_region
          _
        $region92: #{nf_forward.1} parent=67 // pred_fallthru
          _
        // Predicated region
        $region93: #{nf_forward.1} parent=67 // pred_check
          %p1145 = pneg %p384
        $region94: #{nf_forward.1} parent=67 // pred_check_branch
          %1147 = sbr.rel (%p1145) target = $region96
        $region95: #{nf_forward.1} parent=67 // pred_region
          _
        $region96: #{nf_forward.1} parent=67 // pred_fallthru
          _
        // Predicated region
        $region97: #{nf_forward.1} parent=67 // pred_check
          %p1148 = pneg %p342
        $region98: #{nf_forward.1} parent=67 // pred_check_branch
          %1150 = sbr.rel (%p1148) target = $region100
        $region99: #{nf_forward.1} parent=67 // pred_region
          %1151 = dma.done [#allocation5], 128
        $region100: #{nf_forward.1} parent=67 // pred_fallthru
          _
        // Predicated region
        $region101: #{nf_forward.1} parent=67 // pred_check
          %p1152 = pneg %p363
        $region102: #{nf_forward.1} parent=67 // pred_check_branch
          %1154 = sbr.rel (%p1152) target = $region104
        $region103: #{nf_forward.1} parent=67 // pred_region
          _
        $region104: #{nf_forward.1} parent=67 // pred_fallthru
          _
        // Predicated region
        $region105: #{nf_forward.1} parent=67 // pred_check
          %p1155 = pneg %p384
        $region106: #{nf_forward.1} parent=67 // pred_check_branch
          %1157 = sbr.rel (%p1155) target = $region108
        $region107: #{nf_forward.1} parent=67 // pred_region
          _
        $region108: #{nf_forward.1} parent=67 // pred_fallthru
          _
      $region68: #{nf_forward.1} parent=5 // pred_fallthru
        _
      %p1158 = scmp.le.s32.totalorder 2, %s30
      // Predicated region
      $region109: #{nf_forward.1} parent=5 // pred_check
        %p1159 = pneg %p1158
      $region110: #{nf_forward.1} parent=5 // pred_check_branch
        %1161 = sbr.rel (%p1159) target = $region112
      $region111: #{nf_forward.1} parent=5 // pred_region
        %s1162 = ssub.s32 %s30, 2
      $region112: #{nf_forward.1} parent=5 // pred_fallthru
        _
    $region6: #{nf_forward.1} parent=1 // loop_footer
      %s34 = sadd.s32 1, %s30
    $region7: #{nf_forward.1} parent=1 // loop_footer_branch
      %29 = sbr.rel target = $region3
    $region8: #{nf_forward.1} parent=1 // loop_exit
      _
    %1163 = vsyncpa [#allocation4], 1
    %s1164 = scalar_lea.sflag [#allocation4], 1
    %1165 = vsyncpa %s1164, 1
    %1166 = vsyncpa [#allocation7], 1
    %s1167 = scalar_lea.sflag [#allocation7], 1
    %1168 = vsyncpa %s1167, 1
    %1169 = vsyncpa [#allocation5], 1
    %s1170 = scalar_lea.sflag [#allocation5], 1
    %1171 = vsyncpa %s1170, 1

</llo_original>
